<compile_context>
chip_gen: v7x
topology: tpu7x:2x2x1
jax: 0.10.0
libtpu: 0.0.40
codegen_flags: <defaults>
</compile_context>

<pallas_src>
import functools

import jax
import jax.numpy as jnp
from jax.experimental import pallas as pl
from jax.experimental.pallas import tpu as pltpu

# ----------------------------- small Mixtral-like config -----------------------------
HIDDEN = 128
N_HEADS = 4
N_KV_HEADS = 2
HEAD_DIM = HIDDEN // N_HEADS          # 32
INTER = 256
N_EXPERTS = 4
TOP_K = 2
EPS = 1e-5
ROPE_THETA = 10000.0
BATCH = 2
SEQ = 8

D_Q = N_HEADS * HEAD_DIM              # 128
D_KV = N_KV_HEADS * HEAD_DIM          # 64


# ------------------------- kernel 1: RMSNorm + attention + residual -------------------
def _attn_block_kernel(x_ref, ln_ref, wqkv_ref, wo_ref, cos_ref, sin_ref, o_ref,
                       *, n_heads, n_kv_heads, head_dim, eps):
    x = x_ref[0]                                           # (S, H) f32, also the residual
    S = x.shape[0]
    d_q = n_heads * head_dim
    d_kv = n_kv_heads * head_dim
    group = n_heads // n_kv_heads
    half = head_dim // 2
    scale = 1.0 / (head_dim ** 0.5)

    # RMSNorm in f32, cast to bf16 only right before the MXU projection.
    var = jnp.mean(x * x, axis=-1, keepdims=True)
    h = (x * jax.lax.rsqrt(var + eps) * ln_ref[...]).astype(jnp.bfloat16)

    # Single fused projection [Wq | Wk | Wv]: GQA kept at n_kv KV heads, no RoPE
    # columns folded into the weights (~40% fewer QKV FLOPs / weight bytes).
    qkv = jnp.dot(h, wqkv_ref[...], preferred_element_type=jnp.float32)   # (S, d_q+2*d_kv)

    cos = cos_ref[...]                                     # (S, head_dim) f32
    sin = sin_ref[...]

    def rope(t):  # rotate-half RoPE on one (S, head_dim) head slab (f32)
        rot = jnp.concatenate([-t[:, half:], t[:, :half]], axis=-1)
        return t * cos + rot * sin

    # Causal mask; fill value stays in f32.
    row = jax.lax.broadcasted_iota(jnp.int32, (S, S), 0)
    col = jax.lax.broadcasted_iota(jnp.int32, (S, S), 1)
    causal = col <= row

    # RoPE K once per KV head; V taken as-is (GQA head sharing realized in-kernel).
    k_ro, v_h = [], []
    for n in range(n_kv_heads):
        k_n = qkv[:, d_q + n * head_dim:d_q + (n + 1) * head_dim]
        v_n = qkv[:, d_q + d_kv + n * head_dim:d_q + d_kv + (n + 1) * head_dim]
        k_ro.append(rope(k_n).astype(jnp.bfloat16))
        v_h.append(v_n.astype(jnp.bfloat16))

    # Per-head attention on static lane slices — no head-major transposes.
    outs = []
    for hidx in range(n_heads):
        q_h = rope(qkv[:, hidx * head_dim:(hidx + 1) * head_dim]).astype(jnp.bfloat16)
        kv = hidx // group
        s = jnp.einsum("qd,kd->qk", q_h, k_ro[kv],
                       preferred_element_type=jnp.float32) * scale        # (S, S) f32
        s = jnp.where(causal, s, -1e30)
        p = jax.nn.softmax(s, axis=-1).astype(jnp.bfloat16)
        outs.append(jnp.dot(p, v_h[kv], preferred_element_type=jnp.float32))
    attn = jnp.concatenate(outs, axis=-1).astype(jnp.bfloat16)            # (S, d_q)

    out = jnp.dot(attn, wo_ref[...], preferred_element_type=jnp.float32)
    o_ref[0] = out + x                                     # fused residual add
    # TODO(synk): at real Mixtral sizes add token / KV grid axes with flash-style
    # online softmax (f32 m/l/acc scratch, pl.reciprocal(approx=True)) instead of
    # the dense (S, S) scores, and tile the head/hidden dims per generation.


def attention_block(x, ln_w, wqkv, wo, cos, sin):
    B, S, H = x.shape
    d_all = wqkv.shape[1]                                  # d_q + 2*d_kv
    kernel = functools.partial(_attn_block_kernel, n_heads=N_HEADS,
                               n_kv_heads=N_KV_HEADS, head_dim=HEAD_DIM, eps=EPS)
    flops = B * (2 * S * H * d_all + N_HEADS * 4 * S * S * HEAD_DIM + 2 * S * D_Q * H)
    transc = B * (N_HEADS * S * S + 2 * S)
    bytes_acc = 2 * B * S * H * 4 + wqkv.size * 2 + wo.size * 2 + cos.size * 8
    return pl.pallas_call(
        kernel,
        out_shape=jax.ShapeDtypeStruct((B, S, H), jnp.float32),
        grid=(B,),
        in_specs=[pl.BlockSpec((1, S, H), lambda b: (b, 0, 0)),
                  pl.BlockSpec((1, H), lambda b: (0, 0)),
                  pl.BlockSpec((H, d_all), lambda b: (0, 0)),
                  pl.BlockSpec((D_Q, H), lambda b: (0, 0)),
                  pl.BlockSpec((S, HEAD_DIM), lambda b: (0, 0)),
                  pl.BlockSpec((S, HEAD_DIM), lambda b: (0, 0))],
        out_specs=pl.BlockSpec((1, S, H), lambda b: (b, 0, 0)),
        compiler_params=pltpu.CompilerParams(
            dimension_semantics=("parallel",),
            vmem_limit_bytes=32 * 1024 * 1024),
        cost_estimate=pl.CostEstimate(flops=flops, transcendentals=transc,
                                      bytes_accessed=bytes_acc),
    )(x, ln_w.reshape(1, H), wqkv, wo, cos, sin)


# -------------------- kernel 2: RMSNorm + router + MoE experts + residual -------------
def _moe_block_kernel(x_ref, ln_ref, wr_ref, wgu_ref, wd_ref, o_ref,
                      h2b_ref, rw_ref, *, eps, inter, top_k, n_experts):
    e = pl.program_id(1)

    @pl.when(e == 0)
    def _():
        # Post-attention RMSNorm + router computed once per token block.
        x = x_ref[...]                                     # (Tblk, H) f32 (also the residual)
        var = jnp.mean(x * x, axis=-1, keepdims=True)
        h2b = (x * jax.lax.rsqrt(var + eps) * ln_ref[...]).astype(jnp.bfloat16)
        h2b_ref[...] = h2b

        # Router on the bf16 MXU fast path; softmax / top-k stay f32.
        logits = jnp.dot(h2b, wr_ref[...], preferred_element_type=jnp.float32)  # (Tblk, E)
        probs = jax.nn.softmax(logits, axis=-1)

        # Exact top-k with lowest-index tie-breaking (matches jax.lax.top_k).
        eidx = jax.lax.broadcasted_iota(jnp.int32, probs.shape, 1)
        remaining = probs
        picked = jnp.zeros(probs.shape, jnp.bool_)
        total = jnp.zeros(probs.shape[:-1] + (1,), jnp.float32)
        for _ in range(top_k):
            m = jnp.max(remaining, axis=-1, keepdims=True)
            cand = remaining >= m
            first = jnp.min(jnp.where(cand, eidx, n_experts), axis=-1, keepdims=True)
            sel = eidx == first
            picked = jnp.logical_or(picked, sel)
            total = total + m
            remaining = jnp.where(sel, -jnp.inf, remaining)
        rw = jnp.where(picked, probs, 0.0) / total          # (Tblk, E) f32

        # Store routing weights expert-major so each expert step does a direct
        # (Tblk, 1) read instead of a masked cross-lane reduction.
        for ee in range(n_experts):
            rw_ref[ee] = rw[:, ee:ee + 1]

        # Fused residual add: the resident accumulator starts from the residual.
        o_ref[...] = x

    # Per-expert fused gate|up matmul + SwiGLU + down projection (bf16, f32 acc).
    h2b = h2b_ref[...]
    gu = jnp.dot(h2b, wgu_ref[0], preferred_element_type=jnp.float32)     # (Tblk, 2I)
    mid = (jax.nn.silu(gu[:, :inter]) * gu[:, inter:]).astype(jnp.bfloat16)
    d = jnp.dot(mid, wd_ref[0], preferred_element_type=jnp.float32)       # (Tblk, H)
    o_ref[...] += rw_ref[e] * d
    # TODO(synk): at real Mixtral sizes switch to token-grouped (routed) expert
    # evaluation via PrefetchScalarGridSpec group offsets, tile INTER with an
    # extra grid axis sized per generation, and use fp8 expert weights on v7x.


def moe_block(x2d, ln_w, w_router, wgu, wd, *, t_blk=8):
    T, H = x2d.shape
    E, _, I2 = wgu.shape
    I = wd.shape[1]
    kernel = functools.partial(_moe_block_kernel, eps=EPS, inter=I, top_k=TOP_K,
                               n_experts=E)
    flops = 2 * T * H * E + T * E * (2 * H * I2 + 2 * I * H)
    transc = T * E + T * E * I
    bytes_acc = 2 * T * H * 4 + H * E * 2 + wgu.size * 2 + wd.size * 2
    return pl.pallas_call(
        kernel,
        out_shape=jax.ShapeDtypeStruct((T, H), jnp.float32),
        grid=(T // t_blk, E),
        in_specs=[pl.BlockSpec((t_blk, H), lambda t, e: (t, 0)),
                  pl.BlockSpec((1, H), lambda t, e: (0, 0)),
                  pl.BlockSpec((H, E), lambda t, e: (0, 0)),
                  pl.BlockSpec((1, H, I2), lambda t, e: (e, 0, 0)),
                  pl.BlockSpec((1, I, H), lambda t, e: (e, 0, 0))],
        out_specs=pl.BlockSpec((t_blk, H), lambda t, e: (t, 0)),
        scratch_shapes=[pltpu.VMEM((t_blk, H), jnp.bfloat16),
                        pltpu.VMEM((E, t_blk, 1), jnp.float32)],
        compiler_params=pltpu.CompilerParams(
            dimension_semantics=("parallel", "arbitrary"),
            vmem_limit_bytes=32 * 1024 * 1024),
        cost_estimate=pl.CostEstimate(flops=flops, transcendentals=transc,
                                      bytes_accessed=bytes_acc),
    )(x2d, ln_w.reshape(1, H), w_router, wgu, wd)


# ----------------------------------- glue (plain JAX) ---------------------------------
def rope_tables(seq_len, head_dim, theta):
    inv_freq = 1.0 / (theta ** (jnp.arange(0, head_dim, 2, dtype=jnp.float32) / head_dim))
    pos = jnp.arange(seq_len, dtype=jnp.float32)
    freqs = pos[:, None] * inv_freq[None, :]
    emb = jnp.concatenate([freqs, freqs], axis=-1)
    return jnp.cos(emb), jnp.sin(emb)


def prepare_layer_inputs(params):
    # Fused [Wq | Wk | Wv]: KV kept at n_kv heads (GQA), no RoPE folded into weights.
    wqkv = jnp.concatenate([params["wq"], params["wk"], params["wv"]], axis=1)
    # Fused [Wg | Wu] per expert.
    wgu = jnp.concatenate([params["wg"], params["wu"]], axis=-1)     # (E, H, 2I) bf16
    return {"wqkv": wqkv, "wgu": wgu}


def decoder_layer(x, params, prep):
    B, S, H = x.shape
    x_attn = attention_block(x, params["input_ln"], prep["wqkv"], params["wo"],
                             params["cos"], params["sin"])           # includes residual
    out = moe_block(x_attn.reshape(B * S, H), params["post_ln"], params["w_router"],
                    prep["wgu"], params["wd"])                       # includes residual
    # TODO(synk): present_key_value / cos / sin cache outputs and past_key_value
    # (KV-cache) handling of the PyTorch module are not implemented in this toy forward.
    return out.reshape(B, S, H)


# -------------------------------- pure-JAX reference ----------------------------------
def reference_layer(x, params):
    B, S, H = x.shape
    T = B * S
    f32, bf16 = jnp.float32, jnp.bfloat16

    def rms(v, w):
        var = jnp.mean(v * v, axis=-1, keepdims=True)
        return v * jax.lax.rsqrt(var + EPS) * w

    def rotate_half(t):
        half = HEAD_DIM // 2
        return jnp.concatenate([-t[..., half:], t[..., :half]], axis=-1)

    cos, sin = params["cos"], params["sin"]

    residual = x
    h = rms(x, params["input_ln"]).astype(bf16).reshape(T, H)
    q = jnp.dot(h, params["wq"], preferred_element_type=f32).reshape(B, S, N_HEADS, HEAD_DIM)
    k = jnp.dot(h, params["wk"], preferred_element_type=f32).reshape(B, S, N_KV_HEADS, HEAD_DIM)
    v = jnp.dot(h, params["wv"], preferred_element_type=f32).reshape(B, S, N_KV_HEADS, HEAD_DIM)
    q = q * cos[None, :, None, :] + rotate_half(q) * sin[None, :, None, :]
    k = k * cos[None, :, None, :] + rotate_half(k) * sin[None, :, None, :]
    group = N_HEADS // N_KV_HEADS
    k = jnp.repeat(k, group, axis=2)
    v = jnp.repeat(v, group, axis=2)
    s = jnp.einsum("bqhd,bkhd->bhqk", q.astype(bf16), k.astype(bf16),
                   preferred_element_type=f32) * (1.0 / (HEAD_DIM ** 0.5))
    causal = jnp.arange(S)[None, :] <= jnp.arange(S)[:, None]
    s = jnp.where(causal[None, None], s, -1e30)
    p = jax.nn.softmax(s, axis=-1)
    attn = jnp.einsum("bhqk,bkhd->bqhd", p.astype(bf16), v.astype(bf16),
                      preferred_element_type=f32).reshape(T, N_HEADS * HEAD_DIM).astype(bf16)
    x = residual + jnp.dot(attn, params["wo"], preferred_element_type=f32).reshape(B, S, H)

    residual = x
    h2 = rms(x, params["post_ln"]).reshape(T, H)
    h2b = h2.astype(bf16)
    logits = jnp.dot(h2b, params["w_router"], preferred_element_type=f32)
    probs = jax.nn.softmax(logits, axis=-1)
    topv, topi = jax.lax.top_k(probs, TOP_K)
    topv = topv / jnp.sum(topv, axis=-1, keepdims=True)
    rw = jnp.sum(jax.nn.one_hot(topi, N_EXPERTS, dtype=f32) * topv[..., None], axis=1)
    out = jnp.zeros((T, H), f32)
    for e in range(N_EXPERTS):
        g = jnp.dot(h2b, params["wg"][e], preferred_element_type=f32)
        u = jnp.dot(h2b, params["wu"][e], preferred_element_type=f32)
        mid = (jax.nn.silu(g) * u).astype(bf16)
        d = jnp.dot(mid, params["wd"][e], preferred_element_type=f32)
        out = out + rw[:, e:e + 1] * d
    return residual + out.reshape(B, S, H)


# ------------------------------------------ main --------------------------------------
if __name__ == "__main__":
    key = jax.random.PRNGKey(0)
    ks = jax.random.split(key, 12)
    scale = 0.05
    bf16 = jnp.bfloat16
    cos, sin = rope_tables(SEQ, HEAD_DIM, ROPE_THETA)
    params = {
        "input_ln": 1.0 + 0.1 * jax.random.normal(ks[9], (HIDDEN,), jnp.float32),
        "post_ln": 1.0 + 0.1 * jax.random.normal(ks[10], (HIDDEN,), jnp.float32),
        "wq": (scale * jax.random.normal(ks[0], (HIDDEN, D_Q), jnp.float32)).astype(bf16),
        "wk": (scale * jax.random.normal(ks[1], (HIDDEN, D_KV), jnp.float32)).astype(bf16),
        "wv": (scale * jax.random.normal(ks[2], (HIDDEN, D_KV), jnp.float32)).astype(bf16),
        "wo": (scale * jax.random.normal(ks[3], (D_Q, HIDDEN), jnp.float32)).astype(bf16),
        "w_router": (scale * jax.random.normal(ks[4], (HIDDEN, N_EXPERTS), jnp.float32)).astype(bf16),
        "wg": (scale * jax.random.normal(ks[5], (N_EXPERTS, HIDDEN, INTER), jnp.float32)).astype(bf16),
        "wu": (scale * jax.random.normal(ks[6], (N_EXPERTS, HIDDEN, INTER), jnp.float32)).astype(bf16),
        "wd": (scale * jax.random.normal(ks[7], (N_EXPERTS, INTER, HIDDEN), jnp.float32)).astype(bf16),
        "cos": cos,
        "sin": sin,
    }
    prep = prepare_layer_inputs(params)
    x = jax.random.normal(ks[8], (BATCH, SEQ, HIDDEN), jnp.float32)

    out = decoder_layer(x, params, prep)
    out = jax.block_until_ready(out)

    ref = reference_layer(x, params)
    assert out.shape == (BATCH, SEQ, HIDDEN)
    assert bool(jnp.all(jnp.isfinite(out)))
    err = float(jnp.max(jnp.abs(out - ref)))
    assert bool(jnp.allclose(out, ref, rtol=2e-3, atol=2e-3)), err
    print("KERNEL_OK")
</pallas_src>

<mosaic_0001>
module attributes {stable_mosaic.version = 11 : i64} {
  func.func @_attn_block_kernel(%arg0: i32, %arg1: memref<1x8x128xf32, #tpu.memory_space<vmem>>, %arg2: memref<1x128xf32, #tpu.memory_space<vmem>>, %arg3: memref<128x256xbf16, #tpu.memory_space<vmem>>, %arg4: memref<128x128xbf16, #tpu.memory_space<vmem>>, %arg5: memref<8x32xf32, #tpu.memory_space<vmem>>, %arg6: memref<8x32xf32, #tpu.memory_space<vmem>>, %arg7: memref<1x8x128xf32, #tpu.memory_space<vmem>>) attributes {dimension_semantics = [#tpu.dimension_semantics<parallel>], iteration_bounds = array<i64: 2>, scalar_prefetch = 0 : i64, scratch_operands = 0 : i64, tpu.core_type = #tpu.core_type<tc>, window_params = [{transform_indices = @transform_0, window_bounds = array<i64: 1, 8, 128>}, {pipeline_mode = #tpu.pipeline_mode<synchronous>, transform_indices = @transform_1, window_bounds = array<i64: 1, 128>}, {pipeline_mode = #tpu.pipeline_mode<synchronous>, transform_indices = @transform_2, window_bounds = array<i64: 128, 256>}, {pipeline_mode = #tpu.pipeline_mode<synchronous>, transform_indices = @transform_3, window_bounds = array<i64: 128, 128>}, {pipeline_mode = #tpu.pipeline_mode<synchronous>, transform_indices = @transform_4, window_bounds = array<i64: 8, 32>}, {pipeline_mode = #tpu.pipeline_mode<synchronous>, transform_indices = @transform_5, window_bounds = array<i64: 8, 32>}, {transform_indices = @transform_6, window_bounds = array<i64: 1, 8, 128>}]} {
    %c0 = arith.constant 0 : index
    %c0_0 = arith.constant 0 : index
    %c0_1 = arith.constant 0 : index
    %0 = vector.load %arg1[%c0, %c0_0, %c0_1] : memref<1x8x128xf32, #tpu.memory_space<vmem>>, vector<1x8x128xf32>
    %1 = vector.shape_cast %0 : vector<1x8x128xf32> to vector<8x128xf32>
    %2 = arith.mulf %1, %1 : vector<8x128xf32>
    %cst = arith.constant dense<0.000000e+00> : vector<8xf32>
    %3 = vector.multi_reduction <add>, %2, %cst [1] : vector<8x128xf32> to vector<8xf32>
    %4 = vector.shape_cast %3 : vector<8xf32> to vector<8x1xf32>
    %cst_2 = arith.constant 1.280000e+02 : f32
    %5 = vector.broadcast %cst_2 : f32 to vector<8x1xf32>
    %6 = arith.divf %4, %5 : vector<8x1xf32>
    %cst_3 = arith.constant 9.99999974E-6 : f32
    %7 = vector.broadcast %cst_3 : f32 to vector<8x1xf32>
    %8 = arith.addf %6, %7 : vector<8x1xf32>
    %9 = math.rsqrt %8 : vector<8x1xf32>
    %10 = vector.broadcast %9 : vector<8x1xf32> to vector<8x128xf32>
    %11 = arith.mulf %1, %10 : vector<8x128xf32>
    %c0_4 = arith.constant 0 : index
    %c0_5 = arith.constant 0 : index
    %12 = vector.load %arg2[%c0_4, %c0_5] : memref<1x128xf32, #tpu.memory_space<vmem>>, vector<1x128xf32>
    %13 = vector.broadcast %12 : vector<1x128xf32> to vector<8x128xf32>
    %14 = arith.mulf %11, %13 : vector<8x128xf32>
    %15 = arith.truncf %14 : vector<8x128xf32> to vector<8x128xbf16>
    %c0_6 = arith.constant 0 : index
    %c0_7 = arith.constant 0 : index
    %16 = vector.load %arg3[%c0_6, %c0_7] : memref<128x256xbf16, #tpu.memory_space<vmem>>, vector<128x256xbf16>
    %cst_8 = arith.constant dense<0.000000e+00> : vector<8x256xf32>
    %17 = tpu.matmul %15, %16, %cst_8 {dimension_numbers = #tpu.dot_dimension_numbers<[1], [0], [0], [1], [0, 0, 1, 1], [], []>} : vector<8x128xbf16>, vector<128x256xbf16>, vector<8x256xf32> -> vector<8x256xf32>
    %c0_9 = arith.constant 0 : index
    %c0_10 = arith.constant 0 : index
    %18 = vector.load %arg5[%c0_9, %c0_10] : memref<8x32xf32, #tpu.memory_space<vmem>>, vector<8x32xf32>
    %c0_11 = arith.constant 0 : index
    %c0_12 = arith.constant 0 : index
    %19 = vector.load %arg6[%c0_11, %c0_12] : memref<8x32xf32, #tpu.memory_space<vmem>>, vector<8x32xf32>
    %20 = tpu.iota {dimensions = array<i32: 0>} : vector<8x8xi32>
    %21 = tpu.iota {dimensions = array<i32: 1>} : vector<8x8xi32>
    %22 = arith.cmpi sle, %21, %20 : vector<8x8xi32>
    %23 = vector.extract_strided_slice %17 {offsets = [0, 128], sizes = [8, 32], strides = [1, 1]} : vector<8x256xf32> to vector<8x32xf32>
    %24 = vector.extract_strided_slice %17 {offsets = [0, 192], sizes = [8, 32], strides = [1, 1]} : vector<8x256xf32> to vector<8x32xf32>
    %25 = vector.extract_strided_slice %23 {offsets = [0, 16], sizes = [8, 16], strides = [1, 1]} : vector<8x32xf32> to vector<8x16xf32>
    %cst_13 = arith.constant 0.000000e+00 : f32
    %26 = vector.broadcast %cst_13 : f32 to vector<8x16xf32>
    %27 = arith.subf %26, %25 : vector<8x16xf32>
    %28 = vector.extract_strided_slice %23 {offsets = [0, 0], sizes = [8, 16], strides = [1, 1]} : vector<8x32xf32> to vector<8x16xf32>
    %29 = tpu.concatenate %27, %28 in 1 : vector<8x16xf32>, vector<8x16xf32> -> vector<8x32xf32>
    %30 = arith.mulf %23, %18 : vector<8x32xf32>
    %31 = arith.mulf %29, %19 : vector<8x32xf32>
    %32 = arith.addf %30, %31 : vector<8x32xf32>
    %33 = arith.truncf %32 : vector<8x32xf32> to vector<8x32xbf16>
    %34 = arith.truncf %24 : vector<8x32xf32> to vector<8x32xbf16>
    %35 = vector.extract_strided_slice %17 {offsets = [0, 160], sizes = [8, 32], strides = [1, 1]} : vector<8x256xf32> to vector<8x32xf32>
    %36 = vector.extract_strided_slice %17 {offsets = [0, 224], sizes = [8, 32], strides = [1, 1]} : vector<8x256xf32> to vector<8x32xf32>
    %37 = vector.extract_strided_slice %35 {offsets = [0, 16], sizes = [8, 16], strides = [1, 1]} : vector<8x32xf32> to vector<8x16xf32>
    %cst_14 = arith.constant 0.000000e+00 : f32
    %38 = vector.broadcast %cst_14 : f32 to vector<8x16xf32>
    %39 = arith.subf %38, %37 : vector<8x16xf32>
    %40 = vector.extract_strided_slice %35 {offsets = [0, 0], sizes = [8, 16], strides = [1, 1]} : vector<8x32xf32> to vector<8x16xf32>
    %41 = tpu.concatenate %39, %40 in 1 : vector<8x16xf32>, vector<8x16xf32> -> vector<8x32xf32>
    %42 = arith.mulf %35, %18 : vector<8x32xf32>
    %43 = arith.mulf %41, %19 : vector<8x32xf32>
    %44 = arith.addf %42, %43 : vector<8x32xf32>
    %45 = arith.truncf %44 : vector<8x32xf32> to vector<8x32xbf16>
    %46 = arith.truncf %36 : vector<8x32xf32> to vector<8x32xbf16>
    %47 = vector.extract_strided_slice %17 {offsets = [0, 0], sizes = [8, 32], strides = [1, 1]} : vector<8x256xf32> to vector<8x32xf32>
    %48 = vector.extract_strided_slice %47 {offsets = [0, 16], sizes = [8, 16], strides = [1, 1]} : vector<8x32xf32> to vector<8x16xf32>
    %cst_15 = arith.constant 0.000000e+00 : f32
    %49 = vector.broadcast %cst_15 : f32 to vector<8x16xf32>
    %50 = arith.subf %49, %48 : vector<8x16xf32>
    %51 = vector.extract_strided_slice %47 {offsets = [0, 0], sizes = [8, 16], strides = [1, 1]} : vector<8x32xf32> to vector<8x16xf32>
    %52 = tpu.concatenate %50, %51 in 1 : vector<8x16xf32>, vector<8x16xf32> -> vector<8x32xf32>
    %53 = arith.mulf %47, %18 : vector<8x32xf32>
    %54 = arith.mulf %52, %19 : vector<8x32xf32>
    %55 = arith.addf %53, %54 : vector<8x32xf32>
    %56 = arith.truncf %55 : vector<8x32xf32> to vector<8x32xbf16>
    "tpu.trace_start"() <{level = 10 : i32, message = "qd,kd->qk"}> : () -> ()
    %cst_16 = arith.constant dense<0.000000e+00> : vector<8x8xf32>
    %57 = tpu.matmul %56, %33, %cst_16 {dimension_numbers = #tpu.dot_dimension_numbers<[1], [1], [0], [0], [0, 0, 1, 0], [], []>} : vector<8x32xbf16>, vector<8x32xbf16>, vector<8x8xf32> -> vector<8x8xf32>
    "tpu.trace_stop"() : () -> ()
    %cst_17 = arith.constant 0.176776692 : f32
    %58 = vector.broadcast %cst_17 : f32 to vector<8x8xf32>
    %59 = arith.mulf %57, %58 : vector<8x8xf32>
    %cst_18 = arith.constant -1.000000e+30 : f32
    %60 = vector.broadcast %cst_18 : f32 to vector<8x8xf32>
    %61 = arith.select %22, %59, %60 : vector<8x8xi1>, vector<8x8xf32>
    %cst_19 = arith.constant dense<0xFF800000> : vector<8xf32>
    %62 = vector.multi_reduction <maximumf>, %61, %cst_19 [1] : vector<8x8xf32> to vector<8xf32>
    %cst_20 = arith.constant 0xFF800000 : f32
    %63 = vector.broadcast %cst_20 : f32 to vector<8xf32>
    %64 = arith.maximumf %63, %62 : vector<8xf32>
    %65 = vector.shape_cast %64 : vector<8xf32> to vector<8x1xf32>
    %66 = vector.broadcast %65 : vector<8x1xf32> to vector<8x8xf32>
    %67 = arith.subf %61, %66 : vector<8x8xf32>
    %68 = math.exp %67 : vector<8x8xf32>
    %cst_21 = arith.constant dense<0.000000e+00> : vector<8xf32>
    %69 = vector.multi_reduction <add>, %68, %cst_21 [1] : vector<8x8xf32> to vector<8xf32>
    %70 = vector.shape_cast %69 : vector<8xf32> to vector<8x1xf32>
    %71 = vector.broadcast %70 : vector<8x1xf32> to vector<8x8xf32>
    %72 = arith.divf %68, %71 : vector<8x8xf32>
    %73 = arith.truncf %72 : vector<8x8xf32> to vector<8x8xbf16>
    %cst_22 = arith.constant dense<0.000000e+00> : vector<8x32xf32>
    %74 = tpu.matmul %73, %34, %cst_22 {dimension_numbers = #tpu.dot_dimension_numbers<[1], [0], [0], [1], [0, 0, 1, 1], [], []>} : vector<8x8xbf16>, vector<8x32xbf16>, vector<8x32xf32> -> vector<8x32xf32>
    %75 = vector.extract_strided_slice %17 {offsets = [0, 32], sizes = [8, 32], strides = [1, 1]} : vector<8x256xf32> to vector<8x32xf32>
    %76 = vector.extract_strided_slice %75 {offsets = [0, 16], sizes = [8, 16], strides = [1, 1]} : vector<8x32xf32> to vector<8x16xf32>
    %cst_23 = arith.constant 0.000000e+00 : f32
    %77 = vector.broadcast %cst_23 : f32 to vector<8x16xf32>
    %78 = arith.subf %77, %76 : vector<8x16xf32>
    %79 = vector.extract_strided_slice %75 {offsets = [0, 0], sizes = [8, 16], strides = [1, 1]} : vector<8x32xf32> to vector<8x16xf32>
    %80 = tpu.concatenate %78, %79 in 1 : vector<8x16xf32>, vector<8x16xf32> -> vector<8x32xf32>
    %81 = arith.mulf %75, %18 : vector<8x32xf32>
    %82 = arith.mulf %80, %19 : vector<8x32xf32>
    %83 = arith.addf %81, %82 : vector<8x32xf32>
    %84 = arith.truncf %83 : vector<8x32xf32> to vector<8x32xbf16>
    "tpu.trace_start"() <{level = 10 : i32, message = "qd,kd->qk"}> : () -> ()
    %cst_24 = arith.constant dense<0.000000e+00> : vector<8x8xf32>
    %85 = tpu.matmul %84, %33, %cst_24 {dimension_numbers = #tpu.dot_dimension_numbers<[1], [1], [0], [0], [0, 0, 1, 0], [], []>} : vector<8x32xbf16>, vector<8x32xbf16>, vector<8x8xf32> -> vector<8x8xf32>
    "tpu.trace_stop"() : () -> ()
    %cst_25 = arith.constant 0.176776692 : f32
    %86 = vector.broadcast %cst_25 : f32 to vector<8x8xf32>
    %87 = arith.mulf %85, %86 : vector<8x8xf32>
    %cst_26 = arith.constant -1.000000e+30 : f32
    %88 = vector.broadcast %cst_26 : f32 to vector<8x8xf32>
    %89 = arith.select %22, %87, %88 : vector<8x8xi1>, vector<8x8xf32>
    %cst_27 = arith.constant dense<0xFF800000> : vector<8xf32>
    %90 = vector.multi_reduction <maximumf>, %89, %cst_27 [1] : vector<8x8xf32> to vector<8xf32>
    %cst_28 = arith.constant 0xFF800000 : f32
    %91 = vector.broadcast %cst_28 : f32 to vector<8xf32>
    %92 = arith.maximumf %91, %90 : vector<8xf32>
    %93 = vector.shape_cast %92 : vector<8xf32> to vector<8x1xf32>
    %94 = vector.broadcast %93 : vector<8x1xf32> to vector<8x8xf32>
    %95 = arith.subf %89, %94 : vector<8x8xf32>
    %96 = math.exp %95 : vector<8x8xf32>
    %cst_29 = arith.constant dense<0.000000e+00> : vector<8xf32>
    %97 = vector.multi_reduction <add>, %96, %cst_29 [1] : vector<8x8xf32> to vector<8xf32>
    %98 = vector.shape_cast %97 : vector<8xf32> to vector<8x1xf32>
    %99 = vector.broadcast %98 : vector<8x1xf32> to vector<8x8xf32>
    %100 = arith.divf %96, %99 : vector<8x8xf32>
    %101 = arith.truncf %100 : vector<8x8xf32> to vector<8x8xbf16>
    %cst_30 = arith.constant dense<0.000000e+00> : vector<8x32xf32>
    %102 = tpu.matmul %101, %34, %cst_30 {dimension_numbers = #tpu.dot_dimension_numbers<[1], [0], [0], [1], [0, 0, 1, 1], [], []>} : vector<8x8xbf16>, vector<8x32xbf16>, vector<8x32xf32> -> vector<8x32xf32>
    %103 = vector.extract_strided_slice %17 {offsets = [0, 64], sizes = [8, 32], strides = [1, 1]} : vector<8x256xf32> to vector<8x32xf32>
    %104 = vector.extract_strided_slice %103 {offsets = [0, 16], sizes = [8, 16], strides = [1, 1]} : vector<8x32xf32> to vector<8x16xf32>
    %cst_31 = arith.constant 0.000000e+00 : f32
    %105 = vector.broadcast %cst_31 : f32 to vector<8x16xf32>
    %106 = arith.subf %105, %104 : vector<8x16xf32>
    %107 = vector.extract_strided_slice %103 {offsets = [0, 0], sizes = [8, 16], strides = [1, 1]} : vector<8x32xf32> to vector<8x16xf32>
    %108 = tpu.concatenate %106, %107 in 1 : vector<8x16xf32>, vector<8x16xf32> -> vector<8x32xf32>
    %109 = arith.mulf %103, %18 : vector<8x32xf32>
    %110 = arith.mulf %108, %19 : vector<8x32xf32>
    %111 = arith.addf %109, %110 : vector<8x32xf32>
    %112 = arith.truncf %111 : vector<8x32xf32> to vector<8x32xbf16>
    "tpu.trace_start"() <{level = 10 : i32, message = "qd,kd->qk"}> : () -> ()
    %cst_32 = arith.constant dense<0.000000e+00> : vector<8x8xf32>
    %113 = tpu.matmul %112, %45, %cst_32 {dimension_numbers = #tpu.dot_dimension_numbers<[1], [1], [0], [0], [0, 0, 1, 0], [], []>} : vector<8x32xbf16>, vector<8x32xbf16>, vector<8x8xf32> -> vector<8x8xf32>
    "tpu.trace_stop"() : () -> ()
    %cst_33 = arith.constant 0.176776692 : f32
    %114 = vector.broadcast %cst_33 : f32 to vector<8x8xf32>
    %115 = arith.mulf %113, %114 : vector<8x8xf32>
    %cst_34 = arith.constant -1.000000e+30 : f32
    %116 = vector.broadcast %cst_34 : f32 to vector<8x8xf32>
    %117 = arith.select %22, %115, %116 : vector<8x8xi1>, vector<8x8xf32>
    %cst_35 = arith.constant dense<0xFF800000> : vector<8xf32>
    %118 = vector.multi_reduction <maximumf>, %117, %cst_35 [1] : vector<8x8xf32> to vector<8xf32>
    %cst_36 = arith.constant 0xFF800000 : f32
    %119 = vector.broadcast %cst_36 : f32 to vector<8xf32>
    %120 = arith.maximumf %119, %118 : vector<8xf32>
    %121 = vector.shape_cast %120 : vector<8xf32> to vector<8x1xf32>
    %122 = vector.broadcast %121 : vector<8x1xf32> to vector<8x8xf32>
    %123 = arith.subf %117, %122 : vector<8x8xf32>
    %124 = math.exp %123 : vector<8x8xf32>
    %cst_37 = arith.constant dense<0.000000e+00> : vector<8xf32>
    %125 = vector.multi_reduction <add>, %124, %cst_37 [1] : vector<8x8xf32> to vector<8xf32>
    %126 = vector.shape_cast %125 : vector<8xf32> to vector<8x1xf32>
    %127 = vector.broadcast %126 : vector<8x1xf32> to vector<8x8xf32>
    %128 = arith.divf %124, %127 : vector<8x8xf32>
    %129 = arith.truncf %128 : vector<8x8xf32> to vector<8x8xbf16>
    %cst_38 = arith.constant dense<0.000000e+00> : vector<8x32xf32>
    %130 = tpu.matmul %129, %46, %cst_38 {dimension_numbers = #tpu.dot_dimension_numbers<[1], [0], [0], [1], [0, 0, 1, 1], [], []>} : vector<8x8xbf16>, vector<8x32xbf16>, vector<8x32xf32> -> vector<8x32xf32>
    %131 = vector.extract_strided_slice %17 {offsets = [0, 96], sizes = [8, 32], strides = [1, 1]} : vector<8x256xf32> to vector<8x32xf32>
    %132 = vector.extract_strided_slice %131 {offsets = [0, 16], sizes = [8, 16], strides = [1, 1]} : vector<8x32xf32> to vector<8x16xf32>
    %cst_39 = arith.constant 0.000000e+00 : f32
    %133 = vector.broadcast %cst_39 : f32 to vector<8x16xf32>
    %134 = arith.subf %133, %132 : vector<8x16xf32>
    %135 = vector.extract_strided_slice %131 {offsets = [0, 0], sizes = [8, 16], strides = [1, 1]} : vector<8x32xf32> to vector<8x16xf32>
    %136 = tpu.concatenate %134, %135 in 1 : vector<8x16xf32>, vector<8x16xf32> -> vector<8x32xf32>
    %137 = arith.mulf %131, %18 : vector<8x32xf32>
    %138 = arith.mulf %136, %19 : vector<8x32xf32>
    %139 = arith.addf %137, %138 : vector<8x32xf32>
    %140 = arith.truncf %139 : vector<8x32xf32> to vector<8x32xbf16>
    "tpu.trace_start"() <{level = 10 : i32, message = "qd,kd->qk"}> : () -> ()
    %cst_40 = arith.constant dense<0.000000e+00> : vector<8x8xf32>
    %141 = tpu.matmul %140, %45, %cst_40 {dimension_numbers = #tpu.dot_dimension_numbers<[1], [1], [0], [0], [0, 0, 1, 0], [], []>} : vector<8x32xbf16>, vector<8x32xbf16>, vector<8x8xf32> -> vector<8x8xf32>
    "tpu.trace_stop"() : () -> ()
    %cst_41 = arith.constant 0.176776692 : f32
    %142 = vector.broadcast %cst_41 : f32 to vector<8x8xf32>
    %143 = arith.mulf %141, %142 : vector<8x8xf32>
    %cst_42 = arith.constant -1.000000e+30 : f32
    %144 = vector.broadcast %cst_42 : f32 to vector<8x8xf32>
    %145 = arith.select %22, %143, %144 : vector<8x8xi1>, vector<8x8xf32>
    %cst_43 = arith.constant dense<0xFF800000> : vector<8xf32>
    %146 = vector.multi_reduction <maximumf>, %145, %cst_43 [1] : vector<8x8xf32> to vector<8xf32>
    %cst_44 = arith.constant 0xFF800000 : f32
    %147 = vector.broadcast %cst_44 : f32 to vector<8xf32>
    %148 = arith.maximumf %147, %146 : vector<8xf32>
    %149 = vector.shape_cast %148 : vector<8xf32> to vector<8x1xf32>
    %150 = vector.broadcast %149 : vector<8x1xf32> to vector<8x8xf32>
    %151 = arith.subf %145, %150 : vector<8x8xf32>
    %152 = math.exp %151 : vector<8x8xf32>
    %cst_45 = arith.constant dense<0.000000e+00> : vector<8xf32>
    %153 = vector.multi_reduction <add>, %152, %cst_45 [1] : vector<8x8xf32> to vector<8xf32>
    %154 = vector.shape_cast %153 : vector<8xf32> to vector<8x1xf32>
    %155 = vector.broadcast %154 : vector<8x1xf32> to vector<8x8xf32>
    %156 = arith.divf %152, %155 : vector<8x8xf32>
    %157 = arith.truncf %156 : vector<8x8xf32> to vector<8x8xbf16>
    %cst_46 = arith.constant dense<0.000000e+00> : vector<8x32xf32>
    %158 = tpu.matmul %157, %46, %cst_46 {dimension_numbers = #tpu.dot_dimension_numbers<[1], [0], [0], [1], [0, 0, 1, 1], [], []>} : vector<8x8xbf16>, vector<8x32xbf16>, vector<8x32xf32> -> vector<8x32xf32>
    %159 = tpu.concatenate %74, %102, %130, %158 in 1 : vector<8x32xf32>, vector<8x32xf32>, vector<8x32xf32>, vector<8x32xf32> -> vector<8x128xf32>
    %160 = arith.truncf %159 : vector<8x128xf32> to vector<8x128xbf16>
    %c0_47 = arith.constant 0 : index
    %c0_48 = arith.constant 0 : index
    %161 = vector.load %arg4[%c0_47, %c0_48] : memref<128x128xbf16, #tpu.memory_space<vmem>>, vector<128x128xbf16>
    %cst_49 = arith.constant dense<0.000000e+00> : vector<8x128xf32>
    %162 = tpu.matmul %160, %161, %cst_49 {dimension_numbers = #tpu.dot_dimension_numbers<[1], [0], [0], [1], [0, 0, 1, 1], [], []>} : vector<8x128xbf16>, vector<128x128xbf16>, vector<8x128xf32> -> vector<8x128xf32>
    %163 = arith.addf %162, %1 : vector<8x128xf32>
    %c0_50 = arith.constant 0 : index
    %c0_51 = arith.constant 0 : index
    %c0_52 = arith.constant 0 : index
    %164 = vector.load %arg7[%c0_50, %c0_51, %c0_52] : memref<1x8x128xf32, #tpu.memory_space<vmem>>, vector<1x8x128xf32>
    %165 = vector.shape_cast %164 : vector<1x8x128xf32> to vector<8x128xf32>
    %166 = vector.shape_cast %163 : vector<8x128xf32> to vector<1x8x128xf32>
    tpu.vector_store %arg7[%c0_50, %c0_51, %c0_52], %166 {strides = array<i32>} : memref<1x8x128xf32, #tpu.memory_space<vmem>>, vector<1x8x128xf32>,
    return
  }
  func.func @transform_0(%arg0: i32) -> (i32, i32, i32) {
    %c0_i32 = arith.constant 0 : i32
    %c0_i32_0 = arith.constant 0 : i32
    %c0_i32_1 = arith.constant 0 : i32
    return %arg0, %c0_i32, %c0_i32_0 : i32, i32, i32
  }
  func.func @transform_1(%arg0: i32) -> (i32, i32) {
    %c0_i32 = arith.constant 0 : i32
    %c0_i32_0 = arith.constant 0 : i32
    %c0_i32_1 = arith.constant 0 : i32
    return %c0_i32, %c0_i32_0 : i32, i32
  }
  func.func @transform_2(%arg0: i32) -> (i32, i32) {
    %c0_i32 = arith.constant 0 : i32
    %c0_i32_0 = arith.constant 0 : i32
    %c0_i32_1 = arith.constant 0 : i32
    return %c0_i32, %c0_i32_0 : i32, i32
  }
  func.func @transform_3(%arg0: i32) -> (i32, i32) {
    %c0_i32 = arith.constant 0 : i32
    %c0_i32_0 = arith.constant 0 : i32
    %c0_i32_1 = arith.constant 0 : i32
    return %c0_i32, %c0_i32_0 : i32, i32
  }
  func.func @transform_4(%arg0: i32) -> (i32, i32) {
    %c0_i32 = arith.constant 0 : i32
    %c0_i32_0 = arith.constant 0 : i32
    %c0_i32_1 = arith.constant 0 : i32
    return %c0_i32, %c0_i32_0 : i32, i32
  }
  func.func @transform_5(%arg0: i32) -> (i32, i32) {
    %c0_i32 = arith.constant 0 : i32
    %c0_i32_0 = arith.constant 0 : i32
    %c0_i32_1 = arith.constant 0 : i32
    return %c0_i32, %c0_i32_0 : i32, i32
  }
  func.func @transform_6(%arg0: i32) -> (i32, i32, i32) {
    %c0_i32 = arith.constant 0 : i32
    %c0_i32_0 = arith.constant 0 : i32
    %c0_i32_1 = arith.constant 0 : i32
    return %arg0, %c0_i32, %c0_i32_0 : i32, i32, i32
  }
}

</mosaic_0001>

<llo_original>
// kernel: tpu_custom_call.1
$region0: #{tpu_custom_call.1}
  #allocation0 [shape = 'u32[]', space=smem, size = 0x4, offset = 0x4, fixed_abs, tag = 'smem constant byte address 0x4 - core index']
  #allocation1 [shape = 'u32[144,128]{1,0:T(1,128)}', space=vmem, size = 0x12000, scoped, tag = 'internal scratch']
  %s0 = inlined_call_operand.hbm [shape: f32[2,8,128], index: 0, kind: input, shape index: {}]
  %s1 = inlined_call_operand.vmem [shape: f32[1,128], index: 1, kind: input, shape index: {}]
  %s2 = inlined_call_operand.hbm [shape: bf16[128,256], index: 2, kind: input, shape index: {}]
  %s3 = inlined_call_operand.hbm [shape: bf16[128,128], index: 3, kind: input, shape index: {}]
  %s4 = inlined_call_operand.vmem [shape: f32[8,32], index: 4, kind: input, shape index: {}]
  %s5 = inlined_call_operand.vmem [shape: f32[8,32], index: 5, kind: input, shape index: {}]
  %s6 = inlined_call_operand.hbm [shape: f32[2,8,128], index: 6, kind: output, shape index: {}]
  %s7 = sld [smem:[#allocation0]]
  $region69: #{tpu_custom_call.1} parent=0
    _
  %s9 = ssub.s32 1, %s7
  %s10 = scalar_select 0, %s9, %s7
  $region1: #{tpu_custom_call.1} parent=0
    #allocation2 [shape = 'u8[8192]{0}', space=vmem, size = 0x2000, scoped, tag = 'input window, operand 0']
    #allocation3 [shape = 's32[2]{0}', space=sflag, size = 0x8, scoped, tag = 'scoped memory for tpu_custom_call.1']
    #allocation4 [shape = 's32[2]{0}', space=sflag, size = 0x8, scoped, tag = 'scoped memory for tpu_custom_call.1']
    #allocation5 [shape = 'u8[65536]{0}', space=vmem, size = 0x10000, scoped, tag = 'input window, operand 2, single buffered']
    #allocation6 [shape = 's32[1]{0}', space=sflag, size = 0x4, scoped, tag = 'scoped memory for tpu_custom_call.1']
    #allocation7 [shape = 'u8[32768]{0}', space=vmem, size = 0x8000, scoped, tag = 'input window, operand 3, single buffered']
    #allocation8 [shape = 'u8[8192]{0}', space=vmem, size = 0x2000, scoped, tag = 'output window, operand 0']
    %11 = vsyncpa [#allocation3], 0
    %s12 = scalar_lea.sflag [#allocation3], 1
    %13 = vsyncpa %s12, 0
    %14 = vsyncpa [#allocation6], 0
    %15 = vsyncpa [#allocation4], 0
    %s16 = scalar_lea.sflag [#allocation4], 1
    %17 = vsyncpa %s16, 0
    loop: start=0, step=1, limit=4
    $region2: #{tpu_custom_call.1} parent=1 // loop_pre_header
      _
    $region3: #{tpu_custom_call.1} parent=1 // loop_header
      %s19 = sphi 0, %s23
      %p20 = scmp.ge.s32.totalorder %s19, 4
      %s29 = sphi 0, %s31
      %s32 = sphi 0, %s29
      %s33 = sphi 0, %s32
      %s49 = sphi 0, %s33
      %s53 = sphi 0, %s53
      %s55 = sphi 0, %s53
      %s56 = sphi 0, %s55
      %s70 = sphi 0, %s56
      %s74 = sphi 0, %s74
      %s76 = sphi 0, %s74
      %s77 = sphi 0, %s76
      %s91 = sphi 0, %s77
      %s95 = sphi 0, %s95
      %s97 = sphi 0, %s95
      %s98 = sphi 0, %s97
      %s112 = sphi 0, %s98
      %s116 = sphi 0, %s116
      %s118 = sphi 0, %s116
      %s119 = sphi 0, %s118
      %s133 = sphi 0, %s119
      %s137 = sphi 0, %s137
      %s139 = sphi 0, %s137
      %s140 = sphi 0, %s139
      %s154 = sphi 0, %s140
      %s160 = sphi 0, %s162
      %s163 = sphi 0, %s160
      %s164 = sphi 0, %s163
      %s180 = sphi 0, %s164
    $region4: #{tpu_custom_call.1} parent=1 // loop_header_branch
      %22 = sbr.rel (%p20) target = $region8
    $region5: #{tpu_custom_call.1} parent=1 // loop_body
      %s24 = ssub.s32 %s19, 1
      %s25 = ssub.s32 %s19, 2
      %s26 = sadd.s32 %s19, 1
      %s27 = ssub.s32 %s19, %s26
      %p28 = scmp.eq.s32.totalorder %s27, 0
      %s30 = sadd.s32 %s29, 1
      %s31 = scalar_select %p28, %s29, %s30
      %p34 = pneg %p28
      %p35 = scmp.eq.s32.totalorder %s19, 1
      %p36 = por %p34, %p35
      %p37 = scmp.ne.s32.totalorder %s29, %s32
      %p38 = scmp.eq.s32.totalorder %s19, 0
      %p39 = por %p37, %p38
      %p40 = scmp.ne.s32.totalorder %s29, %s32
      %p41 = scmp.eq.s32.totalorder %s24, 1
      %p42 = por %p40, %p41
      %p43 = scmp.ne.s32.totalorder %s32, %s33
      %p44 = scmp.eq.s32.totalorder %s24, 0
      %p45 = por %p43, %p44
      %p46 = scmp.ne.s32.totalorder %s32, %s33
      %p47 = scmp.eq.s32.totalorder %s25, 1
      %p48 = por %p46, %p47
      %p50 = scmp.ne.s32.totalorder %s33, %s49
      %p51 = scmp.eq.s32.totalorder %s25, 0
      %p52 = por %p50, %p51
      %s54 = sadd.s32 %s53, 1
      %p57 = scmp.eq.s32.totalorder %s19, 1
      %p58 = scmp.ne.s32.totalorder %s53, %s55
      %p59 = scmp.eq.s32.totalorder %s19, 0
      %p60 = por %p58, %p59
      %p61 = scmp.ne.s32.totalorder %s53, %s55
      %p62 = scmp.eq.s32.totalorder %s24, 1
      %p63 = por %p61, %p62
      %p64 = scmp.ne.s32.totalorder %s55, %s56
      %p65 = scmp.eq.s32.totalorder %s24, 0
      %p66 = por %p64, %p65
      %p67 = scmp.ne.s32.totalorder %s55, %s56
      %p68 = scmp.eq.s32.totalorder %s25, 1
      %p69 = por %p67, %p68
      %p71 = scmp.ne.s32.totalorder %s56, %s70
      %p72 = scmp.eq.s32.totalorder %s25, 0
      %p73 = por %p71, %p72
      %s75 = sadd.s32 %s74, 1
      %p78 = scmp.eq.s32.totalorder %s19, 1
      %p79 = scmp.ne.s32.totalorder %s74, %s76
      %p80 = scmp.eq.s32.totalorder %s19, 0
      %p81 = por %p79, %p80
      %p82 = scmp.ne.s32.totalorder %s74, %s76
      %p83 = scmp.eq.s32.totalorder %s24, 1
      %p84 = por %p82, %p83
      %p85 = scmp.ne.s32.totalorder %s76, %s77
      %p86 = scmp.eq.s32.totalorder %s24, 0
      %p87 = por %p85, %p86
      %p88 = scmp.ne.s32.totalorder %s76, %s77
      %p89 = scmp.eq.s32.totalorder %s25, 1
      %p90 = por %p88, %p89
      %p92 = scmp.ne.s32.totalorder %s77, %s91
      %p93 = scmp.eq.s32.totalorder %s25, 0
      %p94 = por %p92, %p93
      %s96 = sadd.s32 %s95, 1
      %p99 = scmp.eq.s32.totalorder %s19, 1
      %p100 = scmp.ne.s32.totalorder %s95, %s97
      %p101 = scmp.eq.s32.totalorder %s19, 0
      %p102 = por %p100, %p101
      %p103 = scmp.ne.s32.totalorder %s95, %s97
      %p104 = scmp.eq.s32.totalorder %s24, 1
      %p105 = por %p103, %p104
      %p106 = scmp.ne.s32.totalorder %s97, %s98
      %p107 = scmp.eq.s32.totalorder %s24, 0
      %p108 = por %p106, %p107
      %p109 = scmp.ne.s32.totalorder %s97, %s98
      %p110 = scmp.eq.s32.totalorder %s25, 1
      %p111 = por %p109, %p110
      %p113 = scmp.ne.s32.totalorder %s98, %s112
      %p114 = scmp.eq.s32.totalorder %s25, 0
      %p115 = por %p113, %p114
      %s117 = sadd.s32 %s116, 1
      %p120 = scmp.eq.s32.totalorder %s19, 1
      %p121 = scmp.ne.s32.totalorder %s116, %s118
      %p122 = scmp.eq.s32.totalorder %s19, 0
      %p123 = por %p121, %p122
      %p124 = scmp.ne.s32.totalorder %s116, %s118
      %p125 = scmp.eq.s32.totalorder %s24, 1
      %p126 = por %p124, %p125
      %p127 = scmp.ne.s32.totalorder %s118, %s119
      %p128 = scmp.eq.s32.totalorder %s24, 0
      %p129 = por %p127, %p128
      %p130 = scmp.ne.s32.totalorder %s118, %s119
      %p131 = scmp.eq.s32.totalorder %s25, 1
      %p132 = por %p130, %p131
      %p134 = scmp.ne.s32.totalorder %s119, %s133
      %p135 = scmp.eq.s32.totalorder %s25, 0
      %p136 = por %p134, %p135
      %s138 = sadd.s32 %s137, 1
      %p141 = scmp.eq.s32.totalorder %s19, 1
      %p142 = scmp.ne.s32.totalorder %s137, %s139
      %p143 = scmp.eq.s32.totalorder %s19, 0
      %p144 = por %p142, %p143
      %p145 = scmp.ne.s32.totalorder %s137, %s139
      %p146 = scmp.eq.s32.totalorder %s24, 1
      %p147 = por %p145, %p146
      %p148 = scmp.ne.s32.totalorder %s139, %s140
      %p149 = scmp.eq.s32.totalorder %s24, 0
      %p150 = por %p148, %p149
      %p151 = scmp.ne.s32.totalorder %s139, %s140
      %p152 = scmp.eq.s32.totalorder %s25, 1
      %p153 = por %p151, %p152
      %p155 = scmp.ne.s32.totalorder %s140, %s154
      %p156 = scmp.eq.s32.totalorder %s25, 0
      %p157 = por %p155, %p156
      %s158 = ssub.s32 %s19, %s26
      %p159 = scmp.eq.s32.totalorder %s158, 0
      %s161 = sadd.s32 %s160, 1
      %s162 = scalar_select %p159, %s160, %s161
      %p165 = pneg %p159
      %p166 = scmp.eq.s32.totalorder %s19, 1
      %p167 = por %p165, %p166
      %p168 = scmp.ne.s32.totalorder %s160, %s163
      %p169 = scmp.eq.s32.totalorder %s19, 0
      %p170 = por %p168, %p169
      %p171 = scmp.ne.s32.totalorder %s160, %s163
      %p172 = scmp.eq.s32.totalorder %s24, 1
      %p173 = por %p171, %p172
      %p174 = scmp.ne.s32.totalorder %s163, %s164
      %p175 = scmp.eq.s32.totalorder %s24, 0
      %p176 = por %p174, %p175
      %p177 = scmp.ne.s32.totalorder %s163, %s164
      %p178 = scmp.eq.s32.totalorder %s25, 1
      %p179 = por %p177, %p178
      %p181 = scmp.ne.s32.totalorder %s164, %s180
      %p182 = scmp.eq.s32.totalorder %s25, 0
      %p183 = por %p181, %p182
      %p184 = scmp.le.s32.totalorder 1, %s19
      %p185 = scmp.lt.s32.totalorder %s19, 3
      %p186 = pnand %p184, %p185
      %p187 = pneg %p186
      // Predicated region
      $region9: #{tpu_custom_call.1} parent=5 // pred_check
        _
      $region10: #{tpu_custom_call.1} parent=5 // pred_check_branch
        %189 = sbr.rel (%p186) target = $region12
      $region11: #{tpu_custom_call.1} parent=5 // pred_region
        %s190 = ssub.s32 %s19, 1
        // Predicated region
        $region13: #{tpu_custom_call.1} parent=11 // pred_check
          %p191 = pneg %p66
        $region14: #{tpu_custom_call.1} parent=11 // pred_check_branch
          %193 = sbr.rel (%p191) target = $region16
        $region15: #{tpu_custom_call.1} parent=11 // pred_region
          _
        $region16: #{tpu_custom_call.1} parent=11 // pred_fallthru
          _
        // Predicated region
        $region17: #{tpu_custom_call.1} parent=11 // pred_check
          %p194 = pneg %p87
        $region18: #{tpu_custom_call.1} parent=11 // pred_check_branch
          %196 = sbr.rel (%p194) target = $region20
        $region19: #{tpu_custom_call.1} parent=11 // pred_region
          %s198 = ssub.s32 2048, 2048
          %199 = vsyncadd [#allocation6], %s198
          %s200 = sshll.u32 [#allocation5], 4
          %s201 = int_to_ptr.vmem [resolvable:$true] %s200
          %206 = dma.hbm_to_vmem [thread:$0]  %s2, 2048, %s201, [#allocation6], 128, 128, 8
        $region20: #{tpu_custom_call.1} parent=11 // pred_fallthru
          _
        // Predicated region
        $region21: #{tpu_custom_call.1} parent=11 // pred_check
          %p207 = pneg %p108
        $region22: #{tpu_custom_call.1} parent=11 // pred_check_branch
          %209 = sbr.rel (%p207) target = $region24
        $region23: #{tpu_custom_call.1} parent=11 // pred_region
          %s211 = ssub.s32 1024, 1024
          %212 = vsyncadd [#allocation6], %s211
          %s213 = sshll.u32 [#allocation7], 4
          %s214 = int_to_ptr.vmem [resolvable:$true] %s213
          %219 = dma.hbm_to_vmem [thread:$0]  %s3, 1024, %s214, [#allocation6], 64, 64, 4
        $region24: #{tpu_custom_call.1} parent=11 // pred_fallthru
          _
        // Predicated region
        $region25: #{tpu_custom_call.1} parent=11 // pred_check
          %p220 = pneg %p129
        $region26: #{tpu_custom_call.1} parent=11 // pred_check_branch
          %222 = sbr.rel (%p220) target = $region28
        $region27: #{tpu_custom_call.1} parent=11 // pred_region
          _
        $region28: #{tpu_custom_call.1} parent=11 // pred_fallthru
          _
        // Predicated region
        $region29: #{tpu_custom_call.1} parent=11 // pred_check
          %p223 = pneg %p150
        $region30: #{tpu_custom_call.1} parent=11 // pred_check_branch
          %225 = sbr.rel (%p223) target = $region32
        $region31: #{tpu_custom_call.1} parent=11 // pred_region
          _
        $region32: #{tpu_custom_call.1} parent=11 // pred_fallthru
          _
      $region12: #{tpu_custom_call.1} parent=5 // pred_fallthru
        _
      %p226 = scmp.lt.s32.totalorder %s19, 2
      // Predicated region
      $region33: #{tpu_custom_call.1} parent=5 // pred_check
        %p227 = pneg %p226
      $region34: #{tpu_custom_call.1} parent=5 // pred_check_branch
        %229 = sbr.rel (%p227) target = $region36
      $region35: #{tpu_custom_call.1} parent=5 // pred_region
        // Predicated region
        $region37: #{tpu_custom_call.1} parent=35 // pred_check
          %p230 = pneg %p39
        $region38: #{tpu_custom_call.1} parent=35 // pred_check_branch
          %232 = sbr.rel (%p230) target = $region40
        $region39: #{tpu_custom_call.1} parent=35 // pred_region
          %s233 = sand.u32 %s29, 1
          %s234 = scalar_lea.sflag [#allocation3], %s233
          %s235 = sand.u32 %s29, 1
          %s236 = smul.addr %s235, 8
          %s237 = scalar_lea.vmem [#allocation2], %s236
          %s239 = ssub.s32 128, 128
          %240 = vsyncadd %s234, %s239
          %s241 = smul.addr %s19, 128
          %s242 = scalar_lea.hbm %s0, %s241
          %s244 = sshll.u32 %s237, 4
          %s245 = int_to_ptr.vmem [resolvable:$true] %s244
          %247 = dma.hbm_to_vmem [thread:$0]  %s242, 128, %s245, %s234
        $region40: #{tpu_custom_call.1} parent=35 // pred_fallthru
          _
      $region36: #{tpu_custom_call.1} parent=5 // pred_fallthru
        _
      %p248 = scmp.le.s32.totalorder 1, %s19
      %p249 = scmp.lt.s32.totalorder %s19, 3
      %p250 = pnand %p248, %p249
      %p251 = pneg %p250
      // Predicated region
      $region41: #{tpu_custom_call.1} parent=5 // pred_check
        _
      $region42: #{tpu_custom_call.1} parent=5 // pred_check_branch
        %253 = sbr.rel (%p250) target = $region44
      $region43: #{tpu_custom_call.1} parent=5 // pred_region
        %s254 = ssub.s32 %s19, 1
        %s255 = sand.u32 %s32, 1
        %s256 = scalar_lea.sflag [#allocation3], %s255
        %s257 = sand.u32 %s32, 1
        %s258 = smul.addr %s257, 8
        %s259 = scalar_lea.vmem [#allocation2], %s258
        // Predicated region
        $region45: #{tpu_custom_call.1} parent=43 // pred_check
          %p260 = pneg %p45
        $region46: #{tpu_custom_call.1} parent=43 // pred_check_branch
          %262 = sbr.rel (%p260) target = $region48
        $region47: #{tpu_custom_call.1} parent=43 // pred_region
          %263 = dma.done %s256, 128
        $region48: #{tpu_custom_call.1} parent=43 // pred_fallthru
          _
        // Predicated region
        $region49: #{tpu_custom_call.1} parent=43 // pred_check
          %p264 = pneg %p87
        $region50: #{tpu_custom_call.1} parent=43 // pred_check_branch
          %266 = sbr.rel (%p264) target = $region52
        $region51: #{tpu_custom_call.1} parent=43 // pred_region
          %267 = dma.done [#allocation6], 2048
        $region52: #{tpu_custom_call.1} parent=43 // pred_fallthru
          _
        // Predicated region
        $region53: #{tpu_custom_call.1} parent=43 // pred_check
          %p268 = pneg %p108
        $region54: #{tpu_custom_call.1} parent=43 // pred_check_branch
          %270 = sbr.rel (%p268) target = $region56
        $region55: #{tpu_custom_call.1} parent=43 // pred_region
          %271 = dma.done [#allocation6], 1024
        $region56: #{tpu_custom_call.1} parent=43 // pred_fallthru
          _
        %s272 = sand.u32 %s32, 1
        %s273 = scalar_lea.sflag [#allocation3], %s272
        %s274 = sand.u32 %s32, 1
        %s275 = smul.addr %s274, 8
        %s276 = scalar_lea.vmem [#allocation2], %s275
        %p277 = pneg %p45
        %p278 = pneg %p42
        %p279 = pneg %p66
        %p280 = pneg %p63
        %p281 = pneg %p87
        %p282 = pneg %p84
        %p283 = pneg %p108
        %p284 = pneg %p105
        %p285 = pneg %p129
        %p286 = pneg %p126
        %p287 = pneg %p150
        %p288 = pneg %p147
        %p289 = pneg %p176
        %p290 = pneg %p173
        %s291 = sand.u32 %s163, 1
        %s292 = scalar_lea.sflag [#allocation4], %s291
        %s293 = sand.u32 %s163, 1
        %s294 = smul.addr %s293, 8
        %s295 = scalar_lea.vmem [#allocation8], %s294
        %v297 = vld [vmem:[%s259] sm:$0xff]
        %v298 = vmul.f32 %v297, %v297
        %299 = vadd.xlane.f32.xlu0 %v298
        %v300 = vpop.xlane.xlu0 %299
        %v301 = vrcp.pop 128.0
        %v302 = vmul.f32 %v300, %v301
        %v303 = vadd.f32 %v302, 1e-05
        %v304 = vrsqrt.pop %v303
        %v305 = vmul.f32 %v297, %v304
        %v306 = vld [vmem:[%s1] sm:$0x1]
        %v308 = vlaneseq
        %v309 = vshrl.u32 %v308, 7
        %v310 = vsub.s32 0, %v309
        %v311 = vrot.slane %v306, %v310
        %v313 = vmul.f32 %v305, %v311
        %v314 = vpack.c.bf16 %v313, %v313
        %v315 = vld [vmem:[#allocation5] sm:$0xff]
        %v316 = vld [vmem:[#allocation5 + $0x8] sm:$0xff]
        %v317 = vld [vmem:[#allocation5 + $0x10] sm:$0xff]
        %v318 = vld [vmem:[#allocation5 + $0x18] sm:$0xff]
        %v319 = vld [vmem:[#allocation5 + $0x20] sm:$0xff]
        %v320 = vld [vmem:[#allocation5 + $0x28] sm:$0xff]
        %v321 = vld [vmem:[#allocation5 + $0x30] sm:$0xff]
        %v322 = vld [vmem:[#allocation5 + $0x38] sm:$0xff]
        %v323 = vld [vmem:[#allocation5 + $0x40] sm:$0xff]
        %v324 = vld [vmem:[#allocation5 + $0x48] sm:$0xff]
        %v325 = vld [vmem:[#allocation5 + $0x50] sm:$0xff]
        %v326 = vld [vmem:[#allocation5 + $0x58] sm:$0xff]
        %v327 = vld [vmem:[#allocation5 + $0x60] sm:$0xff]
        %v328 = vld [vmem:[#allocation5 + $0x68] sm:$0xff]
        %v329 = vld [vmem:[#allocation5 + $0x70] sm:$0xff]
        %v330 = vld [vmem:[#allocation5 + $0x78] sm:$0xff]
        %v347 = vunpack.c.l.b16 %v315
        %v348 = vunpack.c.h.b16 %v315
        %v349 = vunpack.c.l.b16 %v316
        %v350 = vunpack.c.h.b16 %v316
        %v351 = vunpack.c.l.b16 %v317
        %v352 = vunpack.c.h.b16 %v317
        %v353 = vunpack.c.l.b16 %v318
        %v354 = vunpack.c.h.b16 %v318
        %v355 = vunpack.c.l.b16 %v319
        %v356 = vunpack.c.h.b16 %v319
        %v357 = vunpack.c.l.b16 %v320
        %v358 = vunpack.c.h.b16 %v320
        %v359 = vunpack.c.l.b16 %v321
        %v360 = vunpack.c.h.b16 %v321
        %v361 = vunpack.c.l.b16 %v322
        %v362 = vunpack.c.h.b16 %v322
        %v363 = vunpack.c.l.b16 %v323
        %v364 = vunpack.c.h.b16 %v323
        %v365 = vunpack.c.l.b16 %v324
        %v366 = vunpack.c.h.b16 %v324
        %v367 = vunpack.c.l.b16 %v325
        %v368 = vunpack.c.h.b16 %v325
        %v369 = vunpack.c.l.b16 %v326
        %v370 = vunpack.c.h.b16 %v326
        %v371 = vunpack.c.l.b16 %v327
        %v372 = vunpack.c.h.b16 %v327
        %v373 = vunpack.c.l.b16 %v328
        %v374 = vunpack.c.h.b16 %v328
        %v375 = vunpack.c.l.b16 %v329
        %v376 = vunpack.c.h.b16 %v329
        %v377 = vunpack.c.l.b16 %v330
        %v378 = vunpack.c.h.b16 %v330
        %v379 = vpack.c.b16 %v349, %v347
        %v380 = vpack.c.b16 %v350, %v348
        %v381 = vpack.c.b16 %v353, %v351
        %v382 = vpack.c.b16 %v354, %v352
        %v383 = vpack.c.b16 %v357, %v355
        %v384 = vpack.c.b16 %v358, %v356
        %v385 = vpack.c.b16 %v361, %v359
        %v386 = vpack.c.b16 %v362, %v360
        %v387 = vpack.c.b16 %v365, %v363
        %v388 = vpack.c.b16 %v366, %v364
        %v389 = vpack.c.b16 %v369, %v367
        %v390 = vpack.c.b16 %v370, %v368
        %v391 = vpack.c.b16 %v373, %v371
        %v392 = vpack.c.b16 %v374, %v372
        %v393 = vpack.c.b16 %v377, %v375
        %v394 = vpack.c.b16 %v378, %v376
        %411 = vmatprep.subr.bf16.mxu0 %v380
        %412 = vmatpush1.bf16.msra.mxu0 %v379
        %413 = vmatprep.subr.bf16.mxu0 %v382
        %414 = vmatpush1.bf16.msra.mxu0 %v381
        %415 = vmatprep.subr.bf16.mxu0 %v384
        %416 = vmatpush1.bf16.msra.mxu0 %v383
        %417 = vmatprep.subr.bf16.mxu0 %v386
        %418 = vmatpush1.bf16.msra.mxu0 %v385
        %419 = vmatprep.subr.bf16.mxu0 %v388
        %420 = vmatpush1.bf16.msra.mxu0 %v387
        %421 = vmatprep.subr.bf16.mxu0 %v390
        %422 = vmatpush1.bf16.msra.mxu0 %v389
        %423 = vmatprep.subr.bf16.mxu0 %v392
        %424 = vmatpush1.bf16.msra.mxu0 %v391
        %425 = vmatprep.subr.bf16.mxu0 %v394
        %426 = vmatpush1.bf16.msra.mxu0 %v393
        %427 = vmatprep.subr.bf16.mxu0 0
        %428 = vmatpush1.bf16.msra.mxu0 0
        %429 = vmatprep.subr.bf16.mxu0 0
        %430 = vmatpush1.bf16.msra.mxu0 0
        %431 = vmatprep.subr.bf16.mxu0 0
        %432 = vmatpush1.bf16.msra.mxu0 0
        %433 = vmatprep.subr.bf16.mxu0 0
        %434 = vmatpush1.bf16.msra.mxu0 0
        %435 = vmatprep.subr.bf16.mxu0 0
        %436 = vmatpush1.bf16.msra.mxu0 0
        %437 = vmatprep.subr.bf16.mxu0 0
        %438 = vmatpush1.bf16.msra.mxu0 0
        %439 = vmatprep.subr.bf16.mxu0 0
        %440 = vmatpush1.bf16.msra.mxu0 0
        %441 = vmatprep.subr.bf16.mxu0 0
        %442 = vmatpush1.bf16.msra.mxu0 0
        %443 = vmatprep.mubr.bf16.mxu0 0
        %444 = vmatmul.mubr.bf16.gmra.mrb[0].mxu0 %v314
        %v445 = vpop.f32.mrb[0].mxu0
        %v446 = vadd.f32 0.0, %v445
        %v447 = vpop.f32.mrb[0].mxu0
        %v448 = vadd.f32 0.0, %v447
        %v449 = vpop.f32.mrb[0].mxu0
        %v450 = vpop.f32.mrb[0].mxu0
        %451 = vdwg.mxu0
        %v452 = vld [vmem:[%s4] sm:$0xff]
        %v453 = vld [vmem:[%s5] sm:$0xff]
        %v454 = vlaneseq
        %v455 = vshrl.u32 %v454, 7
        %v456 = vlaneseq
        %v457 = vand.u32 %v456, 127
        %vm458 = vcmp.le.s32.totalorder %v457, %v455
        %v459 = vsub.f32 0.0, %v448
        %461 = vrot.lane.b32.xlu0 %v459, 112
        %v462 = vpop.permute.xlu0 %461
        %465 = vrot.lane.b32.xlu0 %v448, 16
        %v466 = vpop.permute.xlu0 %465
        %vm468 = vcmask 130048
        %v469 = vsel %vm468, %v462, %v466
        %v470 = vmul.f32 %v448, %v452
        %v471 = vmul.f32 %v469, %v453
        %v472 = vadd.f32 %v470, %v471
        %v473 = vpack.c.bf16 %v472, %v472
        %v474 = vpack.c.bf16 %v448, %v448
        %475 = vrot.lane.b32.xlu0 %v459, 80
        %v476 = vpop.permute.xlu0 %475
        %478 = vrot.lane.b32.xlu0 %v448, 112
        %v479 = vpop.permute.xlu0 %478
        %v481 = vsel %vm468, %v476, %v479
        %483 = vrot.lane.b32.xlu0 %v452, 32
        %v484 = vpop.permute.xlu0 %483
        %v486 = vmul.f32 %v448, %v484
        %v487 = vmul.f32 %v481, %v453
        %489 = vrot.lane.b32.xlu0 %v487, 32
        %v490 = vpop.permute.xlu0 %489
        %v492 = vadd.f32 %v486, %v490
        %v493 = vpack.c.bf16 %v492, %v492
        %v494 = vsub.f32 0.0, %v446
        %496 = vrot.lane.b32.xlu0 %v494, 112
        %v497 = vpop.permute.xlu0 %496
        %500 = vrot.lane.b32.xlu0 %v446, 16
        %v501 = vpop.permute.xlu0 %500
        %v503 = vsel %vm468, %v497, %v501
        %v504 = vmul.f32 %v446, %v452
        %v505 = vmul.f32 %v503, %v453
        %v506 = vadd.f32 %v504, %v505
        %v507 = vpack.c.bf16 %v506, %v506
        %vm508 = vcmask 261120
        %v510 = vsel %vm508, %v507, 0
        %v513 = vsel %vm508, %v473, 0
        %515 = vmatprep.subr.bf16.mxu0 0
        %516 = vmatpush1.bf16.xpose.msra.mxu0 %v513
        %517 = vmatprep.subr.bf16.mxu0 0
        %518 = vmatpush1.bf16.xpose.msra.mxu0 0
        %519 = vmatprep.subr.bf16.mxu0 0
        %520 = vmatpush1.bf16.xpose.msra.mxu0 0
        %521 = vmatprep.subr.bf16.mxu0 0
        %522 = vmatpush1.bf16.xpose.msra.mxu0 0
        %523 = vmatprep.subr.bf16.mxu0 0
        %524 = vmatpush1.bf16.xpose.msra.mxu0 0
        %525 = vmatprep.subr.bf16.mxu0 0
        %526 = vmatpush1.bf16.xpose.msra.mxu0 0
        %527 = vmatprep.subr.bf16.mxu0 0
        %528 = vmatpush1.bf16.xpose.msra.mxu0 0
        %529 = vmatprep.subr.bf16.mxu0 0
        %530 = vmatpush1.bf16.xpose.msra.mxu0 0
        %531 = vmatprep.subr.bf16.mxu0 0
        %532 = vmatpush1.bf16.xpose.msra.mxu0 0
        %533 = vmatprep.subr.bf16.mxu0 0
        %534 = vmatpush1.bf16.xpose.msra.mxu0 0
        %535 = vmatprep.subr.bf16.mxu0 0
        %536 = vmatpush1.bf16.xpose.msra.mxu0 0
        %537 = vmatprep.subr.bf16.mxu0 0
        %538 = vmatpush1.bf16.xpose.msra.mxu0 0
        %539 = vmatprep.subr.bf16.mxu0 0
        %540 = vmatpush1.bf16.xpose.msra.mxu0 0
        %541 = vmatprep.subr.bf16.mxu0 0
        %542 = vmatpush1.bf16.xpose.msra.mxu0 0
        %543 = vmatprep.subr.bf16.mxu0 0
        %544 = vmatpush1.bf16.xpose.msra.mxu0 0
        %545 = vmatprep.subr.bf16.mxu0 0
        %546 = vmatpush1.bf16.xpose.msra.mxu0 0
        %547 = vmatprep.mubr.bf16.mxu0 0
        %548 = vmatmul.mubr.bf16.gmra.mrb[0].mxu0 %v510
        %v549 = vpop.f32.mrb[0].mxu0
        %v550 = vadd.f32 0.0, %v549
        %v551 = vpop.f32.mrb[0].mxu0
        %v552 = vpop.f32.mrb[0].mxu0
        %v553 = vpop.f32.mrb[0].mxu0
        %554 = vdwg.mxu0
        %v555 = vmul.f32 %v550, 0.17677669
        %v556 = vsel %vm458, %v555, -1e+30
        %vm557 = vcmask 64512
        %v558 = vsel %vm557, %v556, -inf
        %559 = vmax.xlane.f32.xlu0 %v558
        %v560 = vpop.xlane.xlu0 %559
        %v561 = vsub.f32 %v556, %v560
        %v562 = vmul.f32 %v561, 1.442695
        %v563 = vpow.pop %v562
        %v564 = vsel %vm557, %v563, 0.0
        %565 = vadd.xlane.f32.xlu0 %v564
        %v566 = vpop.xlane.xlu0 %565
        %v567 = vrcp.pop %v566
        %v568 = vmul.f32 %v563, %v567
        %v569 = vpack.c.bf16 %v568, %v568
        %571 = vrot.lane.b32.xlu0 %v474, 64
        %v572 = vpop.permute.xlu0 %571
        %v574 = vsel %vm557, %v569, 0
        %vm576 = vcmask 1043456
        %v578 = vsel %vm576, %v572, 0
        %580 = vmatprep.subr.bf16.mxu0 0
        %581 = vmatpush1.bf16.msra.mxu0 %v578
        %582 = vmatprep.subr.bf16.mxu0 0
        %583 = vmatpush1.bf16.msra.mxu0 0
        %584 = vmatprep.subr.bf16.mxu0 0
        %585 = vmatpush1.bf16.msra.mxu0 0
        %586 = vmatprep.subr.bf16.mxu0 0
        %587 = vmatpush1.bf16.msra.mxu0 0
        %588 = vmatprep.subr.bf16.mxu0 0
        %589 = vmatpush1.bf16.msra.mxu0 0
        %590 = vmatprep.subr.bf16.mxu0 0
        %591 = vmatpush1.bf16.msra.mxu0 0
        %592 = vmatprep.subr.bf16.mxu0 0
        %593 = vmatpush1.bf16.msra.mxu0 0
        %594 = vmatprep.subr.bf16.mxu0 0
        %595 = vmatpush1.bf16.msra.mxu0 0
        %596 = vmatprep.subr.bf16.mxu0 0
        %597 = vmatpush1.bf16.msra.mxu0 0
        %598 = vmatprep.subr.bf16.mxu0 0
        %599 = vmatpush1.bf16.msra.mxu0 0
        %600 = vmatprep.subr.bf16.mxu0 0
        %601 = vmatpush1.bf16.msra.mxu0 0
        %602 = vmatprep.subr.bf16.mxu0 0
        %603 = vmatpush1.bf16.msra.mxu0 0
        %604 = vmatprep.subr.bf16.mxu0 0
        %605 = vmatpush1.bf16.msra.mxu0 0
        %606 = vmatprep.subr.bf16.mxu0 0
        %607 = vmatpush1.bf16.msra.mxu0 0
        %608 = vmatprep.subr.bf16.mxu0 0
        %609 = vmatpush1.bf16.msra.mxu0 0
        %610 = vmatprep.subr.bf16.mxu0 0
        %611 = vmatpush1.bf16.msra.mxu0 0
        %612 = vmatprep.mubr.bf16.mxu0 0
        %613 = vmatmul.mubr.bf16.gmra.mrb[0].mxu0 %v574
        %v614 = vpop.f32.mrb[0].mxu0
        %v615 = vadd.f32 0.0, %v614
        %v616 = vpop.f32.mrb[0].mxu0
        %v617 = vpop.f32.mrb[0].mxu0
        %v618 = vpop.f32.mrb[0].mxu0
        %619 = vdwg.mxu0
        %620 = vrot.lane.b32.xlu0 %v494, 80
        %v621 = vpop.permute.xlu0 %620
        %623 = vrot.lane.b32.xlu0 %v446, 112
        %v624 = vpop.permute.xlu0 %623
        %v626 = vsel %vm468, %v621, %v624
        %v627 = vmul.f32 %v446, %v484
        %v628 = vmul.f32 %v626, %v453
        %630 = vrot.lane.b32.xlu0 %v628, 32
        %v631 = vpop.permute.xlu0 %630
        %v633 = vadd.f32 %v627, %v631
        %v634 = vpack.c.bf16 %v633, %v633
        %636 = vrot.lane.b32.xlu0 %v634, 96
        %v637 = vpop.permute.xlu0 %636
        %v639 = vsel %vm508, %v637, 0
        %641 = vmatprep.subr.bf16.mxu0 0
        %642 = vmatpush1.bf16.xpose.msra.mxu0 %v513
        %643 = vmatprep.subr.bf16.mxu0 0
        %644 = vmatpush1.bf16.xpose.msra.mxu0 0
        %645 = vmatprep.subr.bf16.mxu0 0
        %646 = vmatpush1.bf16.xpose.msra.mxu0 0
        %647 = vmatprep.subr.bf16.mxu0 0
        %648 = vmatpush1.bf16.xpose.msra.mxu0 0
        %649 = vmatprep.subr.bf16.mxu0 0
        %650 = vmatpush1.bf16.xpose.msra.mxu0 0
        %651 = vmatprep.subr.bf16.mxu0 0
        %652 = vmatpush1.bf16.xpose.msra.mxu0 0
        %653 = vmatprep.subr.bf16.mxu0 0
        %654 = vmatpush1.bf16.xpose.msra.mxu0 0
        %655 = vmatprep.subr.bf16.mxu0 0
        %656 = vmatpush1.bf16.xpose.msra.mxu0 0
        %657 = vmatprep.subr.bf16.mxu0 0
        %658 = vmatpush1.bf16.xpose.msra.mxu0 0
        %659 = vmatprep.subr.bf16.mxu0 0
        %660 = vmatpush1.bf16.xpose.msra.mxu0 0
        %661 = vmatprep.subr.bf16.mxu0 0
        %662 = vmatpush1.bf16.xpose.msra.mxu0 0
        %663 = vmatprep.subr.bf16.mxu0 0
        %664 = vmatpush1.bf16.xpose.msra.mxu0 0
        %665 = vmatprep.subr.bf16.mxu0 0
        %666 = vmatpush1.bf16.xpose.msra.mxu0 0
        %667 = vmatprep.subr.bf16.mxu0 0
        %668 = vmatpush1.bf16.xpose.msra.mxu0 0
        %669 = vmatprep.subr.bf16.mxu0 0
        %670 = vmatpush1.bf16.xpose.msra.mxu0 0
        %671 = vmatprep.subr.bf16.mxu0 0
        %672 = vmatpush1.bf16.xpose.msra.mxu0 0
        %673 = vmatprep.mubr.bf16.mxu0 0
        %674 = vmatmul.mubr.bf16.gmra.mrb[0].mxu0 %v639
        %v675 = vpop.f32.mrb[0].mxu0
        %v676 = vadd.f32 0.0, %v675
        %v677 = vpop.f32.mrb[0].mxu0
        %v678 = vpop.f32.mrb[0].mxu0
        %v679 = vpop.f32.mrb[0].mxu0
        %680 = vdwg.mxu0
        %v681 = vmul.f32 %v676, 0.17677669
        %v682 = vsel %vm458, %v681, -1e+30
        %v683 = vsel %vm557, %v682, -inf
        %684 = vmax.xlane.f32.xlu0 %v683
        %v685 = vpop.xlane.xlu0 %684
        %v686 = vsub.f32 %v682, %v685
        %v687 = vmul.f32 %v686, 1.442695
        %v688 = vpow.pop %v687
        %v689 = vsel %vm557, %v688, 0.0
        %690 = vadd.xlane.f32.xlu0 %v689
        %v691 = vpop.xlane.xlu0 %690
        %v692 = vrcp.pop %v691
        %v693 = vmul.f32 %v688, %v692
        %v694 = vpack.c.bf16 %v693, %v693
        %v696 = vsel %vm557, %v694, 0
        %698 = vmatprep.subr.bf16.mxu0 0
        %699 = vmatpush1.bf16.msra.mxu0 %v578
        %700 = vmatprep.subr.bf16.mxu0 0
        %701 = vmatpush1.bf16.msra.mxu0 0
        %702 = vmatprep.subr.bf16.mxu0 0
        %703 = vmatpush1.bf16.msra.mxu0 0
        %704 = vmatprep.subr.bf16.mxu0 0
        %705 = vmatpush1.bf16.msra.mxu0 0
        %706 = vmatprep.subr.bf16.mxu0 0
        %707 = vmatpush1.bf16.msra.mxu0 0
        %708 = vmatprep.subr.bf16.mxu0 0
        %709 = vmatpush1.bf16.msra.mxu0 0
        %710 = vmatprep.subr.bf16.mxu0 0
        %711 = vmatpush1.bf16.msra.mxu0 0
        %712 = vmatprep.subr.bf16.mxu0 0
        %713 = vmatpush1.bf16.msra.mxu0 0
        %714 = vmatprep.subr.bf16.mxu0 0
        %715 = vmatpush1.bf16.msra.mxu0 0
        %716 = vmatprep.subr.bf16.mxu0 0
        %717 = vmatpush1.bf16.msra.mxu0 0
        %718 = vmatprep.subr.bf16.mxu0 0
        %719 = vmatpush1.bf16.msra.mxu0 0
        %720 = vmatprep.subr.bf16.mxu0 0
        %721 = vmatpush1.bf16.msra.mxu0 0
        %722 = vmatprep.subr.bf16.mxu0 0
        %723 = vmatpush1.bf16.msra.mxu0 0
        %724 = vmatprep.subr.bf16.mxu0 0
        %725 = vmatpush1.bf16.msra.mxu0 0
        %726 = vmatprep.subr.bf16.mxu0 0
        %727 = vmatpush1.bf16.msra.mxu0 0
        %728 = vmatprep.subr.bf16.mxu0 0
        %729 = vmatpush1.bf16.msra.mxu0 0
        %730 = vmatprep.mubr.bf16.mxu0 0
        %731 = vmatmul.mubr.bf16.gmra.mrb[0].mxu0 %v696
        %v732 = vpop.f32.mrb[0].mxu0
        %v733 = vadd.f32 0.0, %v732
        %v734 = vpop.f32.mrb[0].mxu0
        %v735 = vpop.f32.mrb[0].mxu0
        %v736 = vpop.f32.mrb[0].mxu0
        %737 = vdwg.mxu0
        %738 = vrot.lane.b32.xlu0 %v494, 48
        %v739 = vpop.permute.xlu0 %738
        %741 = vrot.lane.b32.xlu0 %v446, 80
        %v742 = vpop.permute.xlu0 %741
        %v744 = vsel %vm468, %v739, %v742
        %745 = vrot.lane.b32.xlu0 %v452, 64
        %v746 = vpop.permute.xlu0 %745
        %v748 = vmul.f32 %v446, %v746
        %v749 = vmul.f32 %v744, %v453
        %751 = vrot.lane.b32.xlu0 %v749, 64
        %v752 = vpop.permute.xlu0 %751
        %v754 = vadd.f32 %v748, %v752
        %v755 = vpack.c.bf16 %v754, %v754
        %757 = vrot.lane.b32.xlu0 %v755, 64
        %v758 = vpop.permute.xlu0 %757
        %760 = vrot.lane.b32.xlu0 %v493, 96
        %v761 = vpop.permute.xlu0 %760
        %v763 = vsel %vm508, %v758, 0
        %v766 = vsel %vm508, %v761, 0
        %768 = vmatprep.subr.bf16.mxu0 0
        %769 = vmatpush1.bf16.xpose.msra.mxu0 %v766
        %770 = vmatprep.subr.bf16.mxu0 0
        %771 = vmatpush1.bf16.xpose.msra.mxu0 0
        %772 = vmatprep.subr.bf16.mxu0 0
        %773 = vmatpush1.bf16.xpose.msra.mxu0 0
        %774 = vmatprep.subr.bf16.mxu0 0
        %775 = vmatpush1.bf16.xpose.msra.mxu0 0
        %776 = vmatprep.subr.bf16.mxu0 0
        %777 = vmatpush1.bf16.xpose.msra.mxu0 0
        %778 = vmatprep.subr.bf16.mxu0 0
        %779 = vmatpush1.bf16.xpose.msra.mxu0 0
        %780 = vmatprep.subr.bf16.mxu0 0
        %781 = vmatpush1.bf16.xpose.msra.mxu0 0
        %782 = vmatprep.subr.bf16.mxu0 0
        %783 = vmatpush1.bf16.xpose.msra.mxu0 0
        %784 = vmatprep.subr.bf16.mxu0 0
        %785 = vmatpush1.bf16.xpose.msra.mxu0 0
        %786 = vmatprep.subr.bf16.mxu0 0
        %787 = vmatpush1.bf16.xpose.msra.mxu0 0
        %788 = vmatprep.subr.bf16.mxu0 0
        %789 = vmatpush1.bf16.xpose.msra.mxu0 0
        %790 = vmatprep.subr.bf16.mxu0 0
        %791 = vmatpush1.bf16.xpose.msra.mxu0 0
        %792 = vmatprep.subr.bf16.mxu0 0
        %793 = vmatpush1.bf16.xpose.msra.mxu0 0
        %794 = vmatprep.subr.bf16.mxu0 0
        %795 = vmatpush1.bf16.xpose.msra.mxu0 0
        %796 = vmatprep.subr.bf16.mxu0 0
        %797 = vmatpush1.bf16.xpose.msra.mxu0 0
        %798 = vmatprep.subr.bf16.mxu0 0
        %799 = vmatpush1.bf16.xpose.msra.mxu0 0
        %800 = vmatprep.mubr.bf16.mxu0 0
        %801 = vmatmul.mubr.bf16.gmra.mrb[0].mxu0 %v763
        %v802 = vpop.f32.mrb[0].mxu0
        %v803 = vadd.f32 0.0, %v802
        %v804 = vpop.f32.mrb[0].mxu0
        %v805 = vpop.f32.mrb[0].mxu0
        %v806 = vpop.f32.mrb[0].mxu0
        %807 = vdwg.mxu0
        %v808 = vmul.f32 %v803, 0.17677669
        %v809 = vsel %vm458, %v808, -1e+30
        %v810 = vsel %vm557, %v809, -inf
        %811 = vmax.xlane.f32.xlu0 %v810
        %v812 = vpop.xlane.xlu0 %811
        %v813 = vsub.f32 %v809, %v812
        %v814 = vmul.f32 %v813, 1.442695
        %v815 = vpow.pop %v814
        %v816 = vsel %vm557, %v815, 0.0
        %817 = vadd.xlane.f32.xlu0 %v816
        %v818 = vpop.xlane.xlu0 %817
        %v819 = vrcp.pop %v818
        %v820 = vmul.f32 %v815, %v819
        %v821 = vpack.c.bf16 %v820, %v820
        %822 = vrot.lane.b32.xlu0 %v474, 32
        %v823 = vpop.permute.xlu0 %822
        %v825 = vsel %vm557, %v821, 0
        %v828 = vsel %vm576, %v823, 0
        %830 = vmatprep.subr.bf16.mxu0 0
        %831 = vmatpush1.bf16.msra.mxu0 %v828
        %832 = vmatprep.subr.bf16.mxu0 0
        %833 = vmatpush1.bf16.msra.mxu0 0
        %834 = vmatprep.subr.bf16.mxu0 0
        %835 = vmatpush1.bf16.msra.mxu0 0
        %836 = vmatprep.subr.bf16.mxu0 0
        %837 = vmatpush1.bf16.msra.mxu0 0
        %838 = vmatprep.subr.bf16.mxu0 0
        %839 = vmatpush1.bf16.msra.mxu0 0
        %840 = vmatprep.subr.bf16.mxu0 0
        %841 = vmatpush1.bf16.msra.mxu0 0
        %842 = vmatprep.subr.bf16.mxu0 0
        %843 = vmatpush1.bf16.msra.mxu0 0
        %844 = vmatprep.subr.bf16.mxu0 0
        %845 = vmatpush1.bf16.msra.mxu0 0
        %846 = vmatprep.subr.bf16.mxu0 0
        %847 = vmatpush1.bf16.msra.mxu0 0
        %848 = vmatprep.subr.bf16.mxu0 0
        %849 = vmatpush1.bf16.msra.mxu0 0
        %850 = vmatprep.subr.bf16.mxu0 0
        %851 = vmatpush1.bf16.msra.mxu0 0
        %852 = vmatprep.subr.bf16.mxu0 0
        %853 = vmatpush1.bf16.msra.mxu0 0
        %854 = vmatprep.subr.bf16.mxu0 0
        %855 = vmatpush1.bf16.msra.mxu0 0
        %856 = vmatprep.subr.bf16.mxu0 0
        %857 = vmatpush1.bf16.msra.mxu0 0
        %858 = vmatprep.subr.bf16.mxu0 0
        %859 = vmatpush1.bf16.msra.mxu0 0
        %860 = vmatprep.subr.bf16.mxu0 0
        %861 = vmatpush1.bf16.msra.mxu0 0
        %862 = vmatprep.mubr.bf16.mxu0 0
        %863 = vmatmul.mubr.bf16.gmra.mrb[0].mxu0 %v825
        %v864 = vpop.f32.mrb[0].mxu0
        %v865 = vadd.f32 0.0, %v864
        %v866 = vpop.f32.mrb[0].mxu0
        %v867 = vpop.f32.mrb[0].mxu0
        %v868 = vpop.f32.mrb[0].mxu0
        %869 = vdwg.mxu0
        %870 = vrot.lane.b32.xlu0 %v494, 16
        %v871 = vpop.permute.xlu0 %870
        %873 = vrot.lane.b32.xlu0 %v446, 48
        %v874 = vpop.permute.xlu0 %873
        %v876 = vsel %vm468, %v871, %v874
        %877 = vrot.lane.b32.xlu0 %v452, 96
        %v878 = vpop.permute.xlu0 %877
        %v880 = vmul.f32 %v446, %v878
        %v881 = vmul.f32 %v876, %v453
        %883 = vrot.lane.b32.xlu0 %v881, 96
        %v884 = vpop.permute.xlu0 %883
        %v886 = vadd.f32 %v880, %v884
        %v887 = vpack.c.bf16 %v886, %v886
        %889 = vrot.lane.b32.xlu0 %v887, 32
        %v890 = vpop.permute.xlu0 %889
        %v892 = vsel %vm508, %v890, 0
        %894 = vmatprep.subr.bf16.mxu0 0
        %895 = vmatpush1.bf16.xpose.msra.mxu0 %v766
        %896 = vmatprep.subr.bf16.mxu0 0
        %897 = vmatpush1.bf16.xpose.msra.mxu0 0
        %898 = vmatprep.subr.bf16.mxu0 0
        %899 = vmatpush1.bf16.xpose.msra.mxu0 0
        %900 = vmatprep.subr.bf16.mxu0 0
        %901 = vmatpush1.bf16.xpose.msra.mxu0 0
        %902 = vmatprep.subr.bf16.mxu0 0
        %903 = vmatpush1.bf16.xpose.msra.mxu0 0
        %904 = vmatprep.subr.bf16.mxu0 0
        %905 = vmatpush1.bf16.xpose.msra.mxu0 0
        %906 = vmatprep.subr.bf16.mxu0 0
        %907 = vmatpush1.bf16.xpose.msra.mxu0 0
        %908 = vmatprep.subr.bf16.mxu0 0
        %909 = vmatpush1.bf16.xpose.msra.mxu0 0
        %910 = vmatprep.subr.bf16.mxu0 0
        %911 = vmatpush1.bf16.xpose.msra.mxu0 0
        %912 = vmatprep.subr.bf16.mxu0 0
        %913 = vmatpush1.bf16.xpose.msra.mxu0 0
        %914 = vmatprep.subr.bf16.mxu0 0
        %915 = vmatpush1.bf16.xpose.msra.mxu0 0
        %916 = vmatprep.subr.bf16.mxu0 0
        %917 = vmatpush1.bf16.xpose.msra.mxu0 0
        %918 = vmatprep.subr.bf16.mxu0 0
        %919 = vmatpush1.bf16.xpose.msra.mxu0 0
        %920 = vmatprep.subr.bf16.mxu0 0
        %921 = vmatpush1.bf16.xpose.msra.mxu0 0
        %922 = vmatprep.subr.bf16.mxu0 0
        %923 = vmatpush1.bf16.xpose.msra.mxu0 0
        %924 = vmatprep.subr.bf16.mxu0 0
        %925 = vmatpush1.bf16.xpose.msra.mxu0 0
        %926 = vmatprep.mubr.bf16.mxu0 0
        %927 = vmatmul.mubr.bf16.gmra.mrb[0].mxu0 %v892
        %v928 = vpop.f32.mrb[0].mxu0
        %v929 = vadd.f32 0.0, %v928
        %v930 = vpop.f32.mrb[0].mxu0
        %v931 = vpop.f32.mrb[0].mxu0
        %v932 = vpop.f32.mrb[0].mxu0
        %933 = vdwg.mxu0
        %v934 = vmul.f32 %v929, 0.17677669
        %v935 = vsel %vm458, %v934, -1e+30
        %v936 = vsel %vm557, %v935, -inf
        %937 = vmax.xlane.f32.xlu0 %v936
        %v938 = vpop.xlane.xlu0 %937
        %v939 = vsub.f32 %v935, %v938
        %v940 = vmul.f32 %v939, 1.442695
        %v941 = vpow.pop %v940
        %v942 = vsel %vm557, %v941, 0.0
        %943 = vadd.xlane.f32.xlu0 %v942
        %v944 = vpop.xlane.xlu0 %943
        %v945 = vrcp.pop %v944
        %v946 = vmul.f32 %v941, %v945
        %v947 = vpack.c.bf16 %v946, %v946
        %v949 = vsel %vm557, %v947, 0
        %951 = vmatprep.subr.bf16.mxu0 0
        %952 = vmatpush1.bf16.msra.mxu0 %v828
        %953 = vmatprep.subr.bf16.mxu0 0
        %954 = vmatpush1.bf16.msra.mxu0 0
        %955 = vmatprep.subr.bf16.mxu0 0
        %956 = vmatpush1.bf16.msra.mxu0 0
        %957 = vmatprep.subr.bf16.mxu0 0
        %958 = vmatpush1.bf16.msra.mxu0 0
        %959 = vmatprep.subr.bf16.mxu0 0
        %960 = vmatpush1.bf16.msra.mxu0 0
        %961 = vmatprep.subr.bf16.mxu0 0
        %962 = vmatpush1.bf16.msra.mxu0 0
        %963 = vmatprep.subr.bf16.mxu0 0
        %964 = vmatpush1.bf16.msra.mxu0 0
        %965 = vmatprep.subr.bf16.mxu0 0
        %966 = vmatpush1.bf16.msra.mxu0 0
        %967 = vmatprep.subr.bf16.mxu0 0
        %968 = vmatpush1.bf16.msra.mxu0 0
        %969 = vmatprep.subr.bf16.mxu0 0
        %970 = vmatpush1.bf16.msra.mxu0 0
        %971 = vmatprep.subr.bf16.mxu0 0
        %972 = vmatpush1.bf16.msra.mxu0 0
        %973 = vmatprep.subr.bf16.mxu0 0
        %974 = vmatpush1.bf16.msra.mxu0 0
        %975 = vmatprep.subr.bf16.mxu0 0
        %976 = vmatpush1.bf16.msra.mxu0 0
        %977 = vmatprep.subr.bf16.mxu0 0
        %978 = vmatpush1.bf16.msra.mxu0 0
        %979 = vmatprep.subr.bf16.mxu0 0
        %980 = vmatpush1.bf16.msra.mxu0 0
        %981 = vmatprep.subr.bf16.mxu0 0
        %982 = vmatpush1.bf16.msra.mxu0 0
        %983 = vmatprep.mubr.bf16.mxu0 0
        %984 = vmatmul.mubr.bf16.gmra.mrb[0].mxu0 %v949
        %v985 = vpop.f32.mrb[0].mxu0
        %v986 = vadd.f32 0.0, %v985
        %v987 = vpop.f32.mrb[0].mxu0
        %v988 = vpop.f32.mrb[0].mxu0
        %v989 = vpop.f32.mrb[0].mxu0
        %990 = vdwg.mxu0
        %992 = vrot.lane.b32.xlu0 %v733, 32
        %v993 = vpop.permute.xlu0 %992
        %996 = vrot.lane.b32.xlu0 %v865, 64
        %v997 = vpop.permute.xlu0 %996
        %1000 = vrot.lane.b32.xlu0 %v986, 96
        %v1001 = vpop.permute.xlu0 %1000
        %v1003 = vsel %vm508, %v615, %v993
        %vm1004 = vcmask 523264
        %v1005 = vsel %vm1004, %v1003, %v997
        %vm1006 = vcmask 785408
        %v1007 = vsel %vm1006, %v1005, %v1001
        %v1008 = vpack.c.bf16 %v1007, %v1007
        %v1009 = vld [vmem:[#allocation7] sm:$0xf]
        %v1010 = vld [vmem:[#allocation7 + $0x4] sm:$0xf]
        %v1011 = vld [vmem:[#allocation7 + $0x8] sm:$0xf]
        %v1012 = vld [vmem:[#allocation7 + $0xc] sm:$0xf]
        %v1013 = vld [vmem:[#allocation7 + $0x10] sm:$0xf]
        %v1014 = vld [vmem:[#allocation7 + $0x14] sm:$0xf]
        %v1015 = vld [vmem:[#allocation7 + $0x18] sm:$0xf]
        %v1016 = vld [vmem:[#allocation7 + $0x1c] sm:$0xf]
        %v1017 = vld [vmem:[#allocation7 + $0x20] sm:$0xf]
        %v1018 = vld [vmem:[#allocation7 + $0x24] sm:$0xf]
        %v1019 = vld [vmem:[#allocation7 + $0x28] sm:$0xf]
        %v1020 = vld [vmem:[#allocation7 + $0x2c] sm:$0xf]
        %v1021 = vld [vmem:[#allocation7 + $0x30] sm:$0xf]
        %v1022 = vld [vmem:[#allocation7 + $0x34] sm:$0xf]
        %v1023 = vld [vmem:[#allocation7 + $0x38] sm:$0xf]
        %v1024 = vld [vmem:[#allocation7 + $0x3c] sm:$0xf]
        %v1041 = vunpack.c.l.b16 %v1009
        %v1042 = vunpack.c.l.b16 %v1010
        %v1043 = vunpack.c.l.b16 %v1011
        %v1044 = vunpack.c.l.b16 %v1012
        %v1045 = vunpack.c.l.b16 %v1013
        %v1046 = vunpack.c.l.b16 %v1014
        %v1047 = vunpack.c.l.b16 %v1015
        %v1048 = vunpack.c.l.b16 %v1016
        %v1049 = vunpack.c.l.b16 %v1017
        %v1050 = vunpack.c.l.b16 %v1018
        %v1051 = vunpack.c.l.b16 %v1019
        %v1052 = vunpack.c.l.b16 %v1020
        %v1053 = vunpack.c.l.b16 %v1021
        %v1054 = vunpack.c.l.b16 %v1022
        %v1055 = vunpack.c.l.b16 %v1023
        %v1056 = vunpack.c.l.b16 %v1024
        %v1057 = vpack.c.b16 %v1042, %v1041
        %v1058 = vpack.c.b16 %v1044, %v1043
        %v1059 = vpack.c.b16 %v1046, %v1045
        %v1060 = vpack.c.b16 %v1048, %v1047
        %v1061 = vpack.c.b16 %v1050, %v1049
        %v1062 = vpack.c.b16 %v1052, %v1051
        %v1063 = vpack.c.b16 %v1054, %v1053
        %v1064 = vpack.c.b16 %v1056, %v1055
        %1073 = vmatprep.subr.bf16.mxu0 0
        %1074 = vmatpush1.bf16.msra.mxu0 %v1057
        %1075 = vmatprep.subr.bf16.mxu0 0
        %1076 = vmatpush1.bf16.msra.mxu0 %v1058
        %1077 = vmatprep.subr.bf16.mxu0 0
        %1078 = vmatpush1.bf16.msra.mxu0 %v1059
        %1079 = vmatprep.subr.bf16.mxu0 0
        %1080 = vmatpush1.bf16.msra.mxu0 %v1060
        %1081 = vmatprep.subr.bf16.mxu0 0
        %1082 = vmatpush1.bf16.msra.mxu0 %v1061
        %1083 = vmatprep.subr.bf16.mxu0 0
        %1084 = vmatpush1.bf16.msra.mxu0 %v1062
        %1085 = vmatprep.subr.bf16.mxu0 0
        %1086 = vmatpush1.bf16.msra.mxu0 %v1063
        %1087 = vmatprep.subr.bf16.mxu0 0
        %1088 = vmatpush1.bf16.msra.mxu0 %v1064
        %1089 = vmatprep.subr.bf16.mxu0 0
        %1090 = vmatpush1.bf16.msra.mxu0 0
        %1091 = vmatprep.subr.bf16.mxu0 0
        %1092 = vmatpush1.bf16.msra.mxu0 0
        %1093 = vmatprep.subr.bf16.mxu0 0
        %1094 = vmatpush1.bf16.msra.mxu0 0
        %1095 = vmatprep.subr.bf16.mxu0 0
        %1096 = vmatpush1.bf16.msra.mxu0 0
        %1097 = vmatprep.subr.bf16.mxu0 0
        %1098 = vmatpush1.bf16.msra.mxu0 0
        %1099 = vmatprep.subr.bf16.mxu0 0
        %1100 = vmatpush1.bf16.msra.mxu0 0
        %1101 = vmatprep.subr.bf16.mxu0 0
        %1102 = vmatpush1.bf16.msra.mxu0 0
        %1103 = vmatprep.subr.bf16.mxu0 0
        %1104 = vmatpush1.bf16.msra.mxu0 0
        %1105 = vmatprep.mubr.bf16.mxu0 0
        %1106 = vmatmul.mubr.bf16.gmra.mrb[0].mxu0 %v1008
        %v1107 = vpop.f32.mrb[0].mxu0
        %v1108 = vadd.f32 %v297, %v1107
        %v1109 = vpop.f32.mrb[0].mxu0
        %v1110 = vpop.f32.mrb[0].mxu0
        %v1111 = vpop.f32.mrb[0].mxu0
        %1112 = vdwg.mxu0
        %1113 = vst [vmem:[%s295] sm:$0xff] %v1108
        %s1114 = sand.u32 %s163, 1
        %s1115 = scalar_lea.sflag [#allocation4], %s1114
        %s1116 = sand.u32 %s163, 1
        %s1117 = smul.addr %s1116, 8
        %s1118 = scalar_lea.vmem [#allocation8], %s1117
        // Predicated region
        $region57: #{tpu_custom_call.1} parent=43 // pred_check
          %p1119 = pneg %p173
        $region58: #{tpu_custom_call.1} parent=43 // pred_check_branch
          %1121 = sbr.rel (%p1119) target = $region60
        $region59: #{tpu_custom_call.1} parent=43 // pred_region
          %s1123 = ssub.s32 128, 128
          %1124 = vsyncadd %s1115, %s1123
          %s1125 = smul.addr %s24, 128
          %s1126 = scalar_lea.hbm %s6, %s1125
          %s1128 = sshll.u32 %s1118, 4
          %s1129 = int_to_ptr.vmem [resolvable:$true] %s1128
          %1131 = dma.vmem_to_hbm [thread:$0]  %s1129, 128, %s1126, %s1115
        $region60: #{tpu_custom_call.1} parent=43 // pred_fallthru
          _
      $region44: #{tpu_custom_call.1} parent=5 // pred_fallthru
        _
      %p1132 = scmp.le.s32.totalorder 2, %s19
      // Predicated region
      $region61: #{tpu_custom_call.1} parent=5 // pred_check
        %p1133 = pneg %p1132
      $region62: #{tpu_custom_call.1} parent=5 // pred_check_branch
        %1135 = sbr.rel (%p1133) target = $region64
      $region63: #{tpu_custom_call.1} parent=5 // pred_region
        %s1136 = ssub.s32 %s19, 2
        // Predicated region
        $region65: #{tpu_custom_call.1} parent=63 // pred_check
          %p1137 = pneg %p179
        $region66: #{tpu_custom_call.1} parent=63 // pred_check_branch
          %1139 = sbr.rel (%p1137) target = $region68
        $region67: #{tpu_custom_call.1} parent=63 // pred_region
          %s1140 = sand.u32 %s164, 1
          %s1141 = scalar_lea.sflag [#allocation4], %s1140
          %s1142 = sand.u32 %s164, 1
          %s1143 = smul.addr %s1142, 8
          %s1144 = scalar_lea.vmem [#allocation8], %s1143
          %1145 = dma.done %s1141, 128
        $region68: #{tpu_custom_call.1} parent=63 // pred_fallthru
          _
      $region64: #{tpu_custom_call.1} parent=5 // pred_fallthru
        _
    $region6: #{tpu_custom_call.1} parent=1 // loop_footer
      %s23 = sadd.s32 1, %s19
    $region7: #{tpu_custom_call.1} parent=1 // loop_footer_branch
      %18 = sbr.rel target = $region3
    $region8: #{tpu_custom_call.1} parent=1 // loop_exit
      _
    %1146 = vsyncpa [#allocation3], 1
    %s1147 = scalar_lea.sflag [#allocation3], 1
    %1148 = vsyncpa %s1147, 1
    %1149 = vsyncpa [#allocation6], 1
    %1150 = vsyncpa [#allocation4], 1
    %s1151 = scalar_lea.sflag [#allocation4], 1
    %1152 = vsyncpa %s1151, 1

</llo_original>
